<compile_context>
chip_gen: v7x
topology: tpu7x:2x2x1
jax: 0.10.0
libtpu: 0.0.40
codegen_flags: <defaults>
</compile_context>

<pallas_src>
import numpy as np
import jax
import jax.numpy as jnp
from jax.experimental import pallas as pl
from jax.experimental.pallas import tpu as pltpu


# ---------------------------------------------------------------------------
# Replicate SquarePartLayer.__init__: build the 0/1 position matrices.
# ---------------------------------------------------------------------------
def _position_matrix(position, edge, resolution):
    m = np.zeros((edge, resolution), dtype=np.float32)
    m[np.arange(edge), position + np.arange(edge)] = 1.0
    return m


def build_square_part_matrices(type_str, resolution, core_size=None):
    """Returns Id (i, R), Jh (j, R), Kw (k, R) exactly as the PyTorch module."""
    axis = ["type_x", "type_y", "type_z"].index(type_str)
    index = [np.array([1, 1, 1]), np.array([1, 1, 1])]
    index[0][axis] = 0
    index[1][axis] = 2
    core = resolution // 2 if core_size is None else core_size
    periphery = (resolution - core) // 2
    position_list = np.array([0, periphery, periphery + core])
    edge_list = np.array([periphery, core])
    edges = edge_list[index[0] % 2]
    tm = [[], [], []]
    p = position_list[index[0]]
    tm[0].append(_position_matrix(int(p[0]), int(edges[0]), resolution))
    tm[1].append(_position_matrix(int(p[1]), int(edges[1]), resolution))
    tm[2].append(_position_matrix(int(p[2]), int(edges[2]), resolution))
    p = position_list[index[1]]
    tm[axis].append(_position_matrix(int(p[axis]), int(edges[axis]), resolution))
    Id = np.concatenate(tm[0], axis=0)
    Jh = np.concatenate(tm[1], axis=0)
    Kw = np.concatenate(tm[2], axis=0)
    return Id, Jh, Kw


# ---------------------------------------------------------------------------
# Parameter-only precompute: fold L, Id, Jh, Kw (and mu) into the weights.
# Cache the result in real use — it only changes when the parameters change.
# ---------------------------------------------------------------------------
def fold_square_part_params(L, U, mu, Id, Jh, Kw, in_channels):
    """Returns (W, b) with W: (n_basis, C*R^3), b: (1, C*R^3) so that the whole
    forward is the single matmul  out_flat = z @ W + b."""
    L = jnp.asarray(L, jnp.float32)
    U = jnp.asarray(U, jnp.float32)
    mu = jnp.asarray(mu, jnp.float32)
    Id = jnp.asarray(Id, jnp.float32)
    Jh = jnp.asarray(Jh, jnp.float32)
    Kw = jnp.asarray(Kw, jnp.float32)
    n_basis, dim = U.shape
    ei, R = Id.shape
    ej, ek = Jh.shape[0], Kw.shape[0]
    assert dim == in_channels * ei * ej * ek
    Us = (L[:, None] * U).reshape(n_basis, in_channels, ei, ej, ek)
    W = jnp.einsum("ncijk,id,jh,kw->ncdhw", Us, Id, Jh, Kw)
    W = W.reshape(n_basis, in_channels * R * R * R)
    b = jnp.einsum("cijk,id,jh,kw->cdhw",
                   mu.reshape(in_channels, ei, ej, ek), Id, Jh, Kw)
    b = b.reshape(1, in_channels * R * R * R)
    return W, b


# ---------------------------------------------------------------------------
# The single fused kernel: out = z @ W + b  (one MXU matmul, f32 accumulation)
# ---------------------------------------------------------------------------
def _fused_forward_kernel(z_ref, w_ref, b_ref, out_ref):
    out_ref[...] = (
        jnp.dot(z_ref[...], w_ref[...], preferred_element_type=jnp.float32)
        + b_ref[...]
    ).astype(out_ref.dtype)


def _pick_lane_tile(N, bytes_per_lane, max_block_bytes=4 * 1024 * 1024):
    """Largest multiple-of-128 divisor of N whose per-step blocks stay under
    max_block_bytes, capped at N // 2 so the grid always has >= 2 "parallel"
    steps (keeps both v7x TensorCores busy; ~0.35 us extra on 1-TC v5e/v6e).
    Falls back to a full-extent block when no such divisor exists."""
    if N % 128 != 0 or N < 256:
        return N
    cap = max(128, min(N // 2, max_block_bytes // max(bytes_per_lane, 1)))
    best, t = 128, 128
    while t <= cap:
        if N % t == 0:
            best = t
        t += 128
    return best


def square_part_forward(z, W, b, in_channels, resolution):
    """z: (B, n_basis) -> (B, C, R, R, R) in one pallas_call."""
    B, n = z.shape
    N = W.shape[1]
    R = resolution
    assert N == in_channels * R * R * R
    # Bytes touched per output lane per grid step (x2 for double buffering).
    bytes_per_lane = 2 * 4 * (n + 1 + B)
    tn = _pick_lane_tile(N, bytes_per_lane)
    grid = (N // tn,)
    flops = 2 * B * n * N
    bytes_accessed = 4 * (B * n + n * N + N + B * N)
    out = pl.pallas_call(
        _fused_forward_kernel,
        out_shape=jax.ShapeDtypeStruct((B, N), jnp.float32),
        grid=grid,
        in_specs=[
            pl.BlockSpec((B, n), lambda t: (0, 0)),    # z (tiny, resident)
            pl.BlockSpec((n, tn), lambda t: (0, t)),   # folded weights
            pl.BlockSpec((1, tn), lambda t: (0, t)),   # folded bias
        ],
        out_specs=pl.BlockSpec((B, tn), lambda t: (0, t)),
        compiler_params=pltpu.CompilerParams(
            dimension_semantics=("parallel",)),
        cost_estimate=pl.CostEstimate(
            flops=flops, transcendentals=0, bytes_accessed=bytes_accessed),
    )(z, W, b)
    return out.reshape(B, in_channels, R, R, R)


if __name__ == "__main__":
    key = jax.random.PRNGKey(0)
    k_z, k_u, k_mu = jax.random.split(key, 3)

    type_str = "type_x"
    resolution = 16
    in_channels = 4
    n_basis = 8
    batch = 2          # NOTE: kernel cost is ~flat in B; batch more z's if possible.

    Id, Jh, Kw = build_square_part_matrices(type_str, resolution)
    ei, ej, ek = Id.shape[0], Jh.shape[0], Kw.shape[0]
    dim = in_channels * ei * ej * ek                                   # 2048

    # SubspaceLayer parameters: orthogonal U, L = [3n, ..., 3], mu.
    U = jax.nn.initializers.orthogonal()(k_u, (n_basis, dim), jnp.float32)
    L = jnp.asarray([3.0 * t for t in range(n_basis, 0, -1)], dtype=jnp.float32)
    # Module initializes mu to zeros; use small random values so the bias path
    # is actually exercised below (any value is valid post-training).
    mu = 0.1 * jax.random.normal(k_mu, (dim,), dtype=jnp.float32)

    z = jax.random.normal(k_z, (batch, n_basis), dtype=jnp.float32)

    # One-time, parameter-only fold (cache W/b in real use).
    W, b = fold_square_part_params(L, U, mu, Id, Jh, Kw, in_channels)

    out = square_part_forward(z, W, b, in_channels, resolution)
    out = jax.block_until_ready(out)
    assert out.shape == (batch, in_channels, resolution, resolution, resolution)

    # float64 numpy reference (exact einsum semantics of the PyTorch module).
    z64, L64, U64, mu64 = (np.asarray(a, np.float64) for a in (z, L, U, mu))
    proj64 = (z64 * L64[None, :]) @ U64 + mu64[None, :]
    x64 = proj64.reshape(batch, in_channels, ei, ej, ek)
    ref = np.einsum("bcijk,id,jh,kw->bcdhw", x64,
                    np.asarray(Id, np.float64), np.asarray(Jh, np.float64),
                    np.asarray(Kw, np.float64), optimize=True)
    assert np.allclose(np.asarray(out, np.float64), ref, rtol=1e-3, atol=1e-3)

    print("KERNEL_OK")
</pallas_src>

<mosaic_0001>
module attributes {stable_mosaic.version = 11 : i64} {
  func.func @_fused_forward_kernel(%arg0: i32, %arg1: memref<2x8xf32, #tpu.memory_space<vmem>>, %arg2: memref<8x8192xf32, #tpu.memory_space<vmem>>, %arg3: memref<1x8192xf32, #tpu.memory_space<vmem>>, %arg4: memref<2x8192xf32, #tpu.memory_space<vmem>>) attributes {dimension_semantics = [#tpu.dimension_semantics<parallel>], iteration_bounds = array<i64: 2>, scalar_prefetch = 0 : i64, scratch_operands = 0 : i64, tpu.core_type = #tpu.core_type<tc>, window_params = [{pipeline_mode = #tpu.pipeline_mode<synchronous>, transform_indices = @transform_0, window_bounds = array<i64: 2, 8>}, {transform_indices = @transform_1, window_bounds = array<i64: 8, 8192>}, {transform_indices = @transform_2, window_bounds = array<i64: 1, 8192>}, {transform_indices = @transform_3, window_bounds = array<i64: 2, 8192>}]} {
    %c0 = arith.constant 0 : index
    %c0_0 = arith.constant 0 : index
    %0 = vector.load %arg1[%c0, %c0_0] : memref<2x8xf32, #tpu.memory_space<vmem>>, vector<2x8xf32>
    %c0_1 = arith.constant 0 : index
    %c0_2 = arith.constant 0 : index
    %1 = vector.load %arg2[%c0_1, %c0_2] : memref<8x8192xf32, #tpu.memory_space<vmem>>, vector<8x8192xf32>
    %cst = arith.constant dense<0.000000e+00> : vector<2x8192xf32>
    %2 = tpu.matmul %0, %1, %cst {dimension_numbers = #tpu.dot_dimension_numbers<[1], [0], [0], [1], [0, 0, 1, 1], [], []>} : vector<2x8xf32>, vector<8x8192xf32>, vector<2x8192xf32> -> vector<2x8192xf32>
    %c0_3 = arith.constant 0 : index
    %c0_4 = arith.constant 0 : index
    %3 = vector.load %arg3[%c0_3, %c0_4] : memref<1x8192xf32, #tpu.memory_space<vmem>>, vector<1x8192xf32>
    %4 = vector.broadcast %3 : vector<1x8192xf32> to vector<2x8192xf32>
    %5 = arith.addf %2, %4 : vector<2x8192xf32>
    %c0_5 = arith.constant 0 : index
    %c0_6 = arith.constant 0 : index
    %6 = vector.load %arg4[%c0_5, %c0_6] : memref<2x8192xf32, #tpu.memory_space<vmem>>, vector<2x8192xf32>
    tpu.vector_store %arg4[%c0_5, %c0_6], %5 {strides = array<i32>} : memref<2x8192xf32, #tpu.memory_space<vmem>>, vector<2x8192xf32>,
    return
  }
  func.func @transform_0(%arg0: i32) -> (i32, i32) {
    %c0_i32 = arith.constant 0 : i32
    %c0_i32_0 = arith.constant 0 : i32
    %c0_i32_1 = arith.constant 0 : i32
    return %c0_i32, %c0_i32_0 : i32, i32
  }
  func.func @transform_1(%arg0: i32) -> (i32, i32) {
    %c0_i32 = arith.constant 0 : i32
    %c0_i32_0 = arith.constant 0 : i32
    return %c0_i32, %arg0 : i32, i32
  }
  func.func @transform_2(%arg0: i32) -> (i32, i32) {
    %c0_i32 = arith.constant 0 : i32
    %c0_i32_0 = arith.constant 0 : i32
    return %c0_i32, %arg0 : i32, i32
  }
  func.func @transform_3(%arg0: i32) -> (i32, i32) {
    %c0_i32 = arith.constant 0 : i32
    %c0_i32_0 = arith.constant 0 : i32
    return %c0_i32, %arg0 : i32, i32
  }
}

</mosaic_0001>

<llo_original>
// kernel: tpu_custom_call.1
$region0: #{tpu_custom_call.1}
  #allocation0 [shape = 'u32[]', space=smem, size = 0x4, offset = 0x4, fixed_abs, tag = 'smem constant byte address 0x4 - core index']
  #allocation1 [shape = 'u32[144,128]{1,0:T(1,128)}', space=vmem, size = 0x12000, scoped, tag = 'internal scratch']
  %s0 = inlined_call_operand.hbm [shape: f32[2,8], index: 0, kind: input, shape index: {}]
  %s1 = inlined_call_operand.hbm [shape: f32[8,16384], index: 1, kind: input, shape index: {}]
  %s2 = inlined_call_operand.hbm [shape: f32[1,16384], index: 2, kind: input, shape index: {}]
  %s3 = inlined_call_operand.hbm [shape: f32[2,16384], index: 3, kind: output, shape index: {}]
  %s4 = sld [smem:[#allocation0]]
  $region57: #{tpu_custom_call.1} parent=0
    _
  %s6 = ssub.s32 1, %s4
  %s7 = scalar_select 0, %s6, %s4
  $region1: #{tpu_custom_call.1} parent=0
    #allocation2 [shape = 'u8[1024]{0}', space=vmem, size = 0x400, scoped, tag = 'input window, operand 0, single buffered']
    #allocation3 [shape = 's32[2]{0}', space=sflag, size = 0x8, scoped, tag = 'scoped memory for tpu_custom_call.1']
    #allocation4 [shape = 's32[2]{0}', space=sflag, size = 0x8, scoped, tag = 'scoped memory for tpu_custom_call.1']
    #allocation5 [shape = 'u8[524288]{0}', space=vmem, size = 0x80000, scoped, tag = 'input window, operand 1']
    #allocation6 [shape = 's32[2]{0}', space=sflag, size = 0x8, scoped, tag = 'scoped memory for tpu_custom_call.1']
    #allocation7 [shape = 'u8[65536]{0}', space=vmem, size = 0x10000, scoped, tag = 'input window, operand 2']
    #allocation8 [shape = 'u8[131072]{0}', space=vmem, size = 0x20000, scoped, tag = 'output window, operand 0']
    %8 = vsyncpa [#allocation3], 0
    %9 = vsyncpa [#allocation6], 0
    %s10 = scalar_lea.sflag [#allocation6], 1
    %11 = vsyncpa %s10, 0
    %12 = vsyncpa [#allocation4], 0
    %s13 = scalar_lea.sflag [#allocation4], 1
    %14 = vsyncpa %s13, 0
    loop: start=0, step=1, limit=4
    $region2: #{tpu_custom_call.1} parent=1 // loop_pre_header
      _
    $region3: #{tpu_custom_call.1} parent=1 // loop_header
      %s16 = sphi 0, %s20
      %p17 = scmp.ge.s32.totalorder %s16, 4
      %s24 = sphi 0, %s24
      %s26 = sphi 0, %s24
      %s27 = sphi 0, %s26
      %s41 = sphi 0, %s27
      %s47 = sphi 0, %s49
      %s50 = sphi 0, %s47
      %s51 = sphi 0, %s50
      %s67 = sphi 0, %s51
      %s73 = sphi 0, %s75
      %s76 = sphi 0, %s73
      %s77 = sphi 0, %s76
      %s93 = sphi 0, %s77
      %s99 = sphi 0, %s101
      %s102 = sphi 0, %s99
      %s103 = sphi 0, %s102
      %s119 = sphi 0, %s103
    $region4: #{tpu_custom_call.1} parent=1 // loop_header_branch
      %19 = sbr.rel (%p17) target = $region8
    $region5: #{tpu_custom_call.1} parent=1 // loop_body
      %s21 = ssub.s32 %s16, 1
      %s22 = ssub.s32 %s16, 2
      %s23 = sadd.s32 %s16, 1
      %s25 = sadd.s32 %s24, 1
      %p28 = scmp.eq.s32.totalorder %s16, 1
      %p29 = scmp.ne.s32.totalorder %s24, %s26
      %p30 = scmp.eq.s32.totalorder %s16, 0
      %p31 = por %p29, %p30
      %p32 = scmp.ne.s32.totalorder %s24, %s26
      %p33 = scmp.eq.s32.totalorder %s21, 1
      %p34 = por %p32, %p33
      %p35 = scmp.ne.s32.totalorder %s26, %s27
      %p36 = scmp.eq.s32.totalorder %s21, 0
      %p37 = por %p35, %p36
      %p38 = scmp.ne.s32.totalorder %s26, %s27
      %p39 = scmp.eq.s32.totalorder %s22, 1
      %p40 = por %p38, %p39
      %p42 = scmp.ne.s32.totalorder %s27, %s41
      %p43 = scmp.eq.s32.totalorder %s22, 0
      %p44 = por %p42, %p43
      %s45 = ssub.s32 %s16, %s23
      %p46 = scmp.eq.s32.totalorder %s45, 0
      %s48 = sadd.s32 %s47, 1
      %s49 = scalar_select %p46, %s47, %s48
      %p52 = pneg %p46
      %p53 = scmp.eq.s32.totalorder %s16, 1
      %p54 = por %p52, %p53
      %p55 = scmp.ne.s32.totalorder %s47, %s50
      %p56 = scmp.eq.s32.totalorder %s16, 0
      %p57 = por %p55, %p56
      %p58 = scmp.ne.s32.totalorder %s47, %s50
      %p59 = scmp.eq.s32.totalorder %s21, 1
      %p60 = por %p58, %p59
      %p61 = scmp.ne.s32.totalorder %s50, %s51
      %p62 = scmp.eq.s32.totalorder %s21, 0
      %p63 = por %p61, %p62
      %p64 = scmp.ne.s32.totalorder %s50, %s51
      %p65 = scmp.eq.s32.totalorder %s22, 1
      %p66 = por %p64, %p65
      %p68 = scmp.ne.s32.totalorder %s51, %s67
      %p69 = scmp.eq.s32.totalorder %s22, 0
      %p70 = por %p68, %p69
      %s71 = ssub.s32 %s16, %s23
      %p72 = scmp.eq.s32.totalorder %s71, 0
      %s74 = sadd.s32 %s73, 1
      %s75 = scalar_select %p72, %s73, %s74
      %p78 = pneg %p72
      %p79 = scmp.eq.s32.totalorder %s16, 1
      %p80 = por %p78, %p79
      %p81 = scmp.ne.s32.totalorder %s73, %s76
      %p82 = scmp.eq.s32.totalorder %s16, 0
      %p83 = por %p81, %p82
      %p84 = scmp.ne.s32.totalorder %s73, %s76
      %p85 = scmp.eq.s32.totalorder %s21, 1
      %p86 = por %p84, %p85
      %p87 = scmp.ne.s32.totalorder %s76, %s77
      %p88 = scmp.eq.s32.totalorder %s21, 0
      %p89 = por %p87, %p88
      %p90 = scmp.ne.s32.totalorder %s76, %s77
      %p91 = scmp.eq.s32.totalorder %s22, 1
      %p92 = por %p90, %p91
      %p94 = scmp.ne.s32.totalorder %s77, %s93
      %p95 = scmp.eq.s32.totalorder %s22, 0
      %p96 = por %p94, %p95
      %s97 = ssub.s32 %s16, %s23
      %p98 = scmp.eq.s32.totalorder %s97, 0
      %s100 = sadd.s32 %s99, 1
      %s101 = scalar_select %p98, %s99, %s100
      %p104 = pneg %p98
      %p105 = scmp.eq.s32.totalorder %s16, 1
      %p106 = por %p104, %p105
      %p107 = scmp.ne.s32.totalorder %s99, %s102
      %p108 = scmp.eq.s32.totalorder %s16, 0
      %p109 = por %p107, %p108
      %p110 = scmp.ne.s32.totalorder %s99, %s102
      %p111 = scmp.eq.s32.totalorder %s21, 1
      %p112 = por %p110, %p111
      %p113 = scmp.ne.s32.totalorder %s102, %s103
      %p114 = scmp.eq.s32.totalorder %s21, 0
      %p115 = por %p113, %p114
      %p116 = scmp.ne.s32.totalorder %s102, %s103
      %p117 = scmp.eq.s32.totalorder %s22, 1
      %p118 = por %p116, %p117
      %p120 = scmp.ne.s32.totalorder %s103, %s119
      %p121 = scmp.eq.s32.totalorder %s22, 0
      %p122 = por %p120, %p121
      %p123 = scmp.le.s32.totalorder 1, %s16
      %p124 = scmp.lt.s32.totalorder %s16, 3
      %p125 = pnand %p123, %p124
      %p126 = pneg %p125
      // Predicated region
      $region9: #{tpu_custom_call.1} parent=5 // pred_check
        _
      $region10: #{tpu_custom_call.1} parent=5 // pred_check_branch
        %128 = sbr.rel (%p125) target = $region12
      $region11: #{tpu_custom_call.1} parent=5 // pred_region
        %s129 = ssub.s32 %s16, 1
        // Predicated region
        $region13: #{tpu_custom_call.1} parent=11 // pred_check
          %p130 = pneg %p37
        $region14: #{tpu_custom_call.1} parent=11 // pred_check_branch
          %132 = sbr.rel (%p130) target = $region16
        $region15: #{tpu_custom_call.1} parent=11 // pred_region
          %s134 = ssub.s32 32, 32
          %135 = vsyncadd [#allocation3], %s134
          %s137 = sshll.u32 [#allocation2], 4
          %s138 = int_to_ptr.vmem [resolvable:$true] %s137
          %140 = dma.hbm_to_vmem [thread:$0]  %s0, 32, %s138, [#allocation3]
        $region16: #{tpu_custom_call.1} parent=11 // pred_fallthru
          _
      $region12: #{tpu_custom_call.1} parent=5 // pred_fallthru
        _
      %p141 = scmp.lt.s32.totalorder %s16, 2
      // Predicated region
      $region17: #{tpu_custom_call.1} parent=5 // pred_check
        %p142 = pneg %p141
      $region18: #{tpu_custom_call.1} parent=5 // pred_check_branch
        %144 = sbr.rel (%p142) target = $region20
      $region19: #{tpu_custom_call.1} parent=5 // pred_region
        // Predicated region
        $region21: #{tpu_custom_call.1} parent=19 // pred_check
          %p145 = pneg %p57
        $region22: #{tpu_custom_call.1} parent=19 // pred_check_branch
          %147 = sbr.rel (%p145) target = $region24
        $region23: #{tpu_custom_call.1} parent=19 // pred_region
          %s148 = sand.u32 %s16, 1
          %s149 = scalar_lea.sflag [#allocation6], %s148
          %s150 = sand.u32 %s47, 1
          %s151 = smul.addr %s150, 512
          %s152 = scalar_lea.vmem [#allocation5], %s151
          %s153 = smul.u32 64, %s16
          %s155 = ssub.s32 8192, 8192
          %156 = vsyncadd %s149, %s155
          %s157 = smul.addr %s153, 128
          %s158 = scalar_lea.hbm %s1, %s157
          %s160 = sshll.u32 %s152, 4
          %s161 = int_to_ptr.vmem [resolvable:$true] %s160
          %163 = dma.hbm_to_vmem [thread:$0]  %s158, 8192, %s161, %s149
        $region24: #{tpu_custom_call.1} parent=19 // pred_fallthru
          _
        // Predicated region
        $region25: #{tpu_custom_call.1} parent=19 // pred_check
          %p164 = pneg %p83
        $region26: #{tpu_custom_call.1} parent=19 // pred_check_branch
          %166 = sbr.rel (%p164) target = $region28
        $region27: #{tpu_custom_call.1} parent=19 // pred_region
          %s167 = sand.u32 %s16, 1
          %s168 = scalar_lea.sflag [#allocation6], %s167
          %s169 = sand.u32 %s73, 1
          %s170 = smul.addr %s169, 64
          %s171 = scalar_lea.vmem [#allocation7], %s170
          %s172 = smul.u32 64, %s16
          %s174 = ssub.s32 1024, 1024
          %175 = vsyncadd %s168, %s174
          %s176 = smul.addr %s172, 16
          %s177 = scalar_lea.hbm %s2, %s176
          %s179 = sshll.u32 %s171, 4
          %s180 = int_to_ptr.vmem [resolvable:$true] %s179
          %182 = dma.hbm_to_vmem [thread:$0]  %s177, 1024, %s180, %s168
        $region28: #{tpu_custom_call.1} parent=19 // pred_fallthru
          _
      $region20: #{tpu_custom_call.1} parent=5 // pred_fallthru
        _
      %p183 = scmp.le.s32.totalorder 1, %s16
      %p184 = scmp.lt.s32.totalorder %s16, 3
      %p185 = pnand %p183, %p184
      %p186 = pneg %p185
      // Predicated region
      $region29: #{tpu_custom_call.1} parent=5 // pred_check
        _
      $region30: #{tpu_custom_call.1} parent=5 // pred_check_branch
        %188 = sbr.rel (%p185) target = $region32
      $region31: #{tpu_custom_call.1} parent=5 // pred_region
        %s189 = ssub.s32 %s16, 1
        // Predicated region
        $region33: #{tpu_custom_call.1} parent=31 // pred_check
          %p190 = pneg %p37
        $region34: #{tpu_custom_call.1} parent=31 // pred_check_branch
          %192 = sbr.rel (%p190) target = $region36
        $region35: #{tpu_custom_call.1} parent=31 // pred_region
          %193 = dma.done [#allocation3], 32
        $region36: #{tpu_custom_call.1} parent=31 // pred_fallthru
          _
        %s194 = sand.u32 %s21, 1
        %s195 = scalar_lea.sflag [#allocation6], %s194
        %s196 = sand.u32 %s50, 1
        %s197 = smul.addr %s196, 512
        %s198 = scalar_lea.vmem [#allocation5], %s197
        // Predicated region
        $region37: #{tpu_custom_call.1} parent=31 // pred_check
          %p199 = pneg %p63
        $region38: #{tpu_custom_call.1} parent=31 // pred_check_branch
          %201 = sbr.rel (%p199) target = $region40
        $region39: #{tpu_custom_call.1} parent=31 // pred_region
          %202 = dma.done %s195, 8192
        $region40: #{tpu_custom_call.1} parent=31 // pred_fallthru
          _
        %s203 = sand.u32 %s21, 1
        %s204 = scalar_lea.sflag [#allocation6], %s203
        %s205 = sand.u32 %s76, 1
        %s206 = smul.addr %s205, 64
        %s207 = scalar_lea.vmem [#allocation7], %s206
        // Predicated region
        $region41: #{tpu_custom_call.1} parent=31 // pred_check
          %p208 = pneg %p89
        $region42: #{tpu_custom_call.1} parent=31 // pred_check_branch
          %210 = sbr.rel (%p208) target = $region44
        $region43: #{tpu_custom_call.1} parent=31 // pred_region
          %211 = dma.done %s204, 1024
        $region44: #{tpu_custom_call.1} parent=31 // pred_fallthru
          _
        %p212 = pneg %p37
        %p213 = pneg %p34
        %s214 = sand.u32 %s21, 1
        %s215 = scalar_lea.sflag [#allocation6], %s214
        %s216 = sand.u32 %s50, 1
        %s217 = smul.addr %s216, 512
        %s218 = scalar_lea.vmem [#allocation5], %s217
        %p219 = pneg %p63
        %p220 = pneg %p60
        %s221 = sand.u32 %s21, 1
        %s222 = scalar_lea.sflag [#allocation6], %s221
        %s223 = sand.u32 %s76, 1
        %s224 = smul.addr %s223, 64
        %s225 = scalar_lea.vmem [#allocation7], %s224
        %p226 = pneg %p89
        %p227 = pneg %p86
        %p228 = pneg %p115
        %p229 = pneg %p112
        %s230 = sand.u32 %s102, 1
        %s231 = scalar_lea.sflag [#allocation4], %s230
        %s232 = sand.u32 %s102, 1
        %s233 = smul.addr %s232, 128
        %s234 = scalar_lea.vmem [#allocation8], %s233
        %s235 = smul.u32 64, %s21
        %s236 = smul.u32 64, %s21
        %s237 = smul.u32 64, %s21
        %v238 = vld [vmem:[#allocation2] sm:$0x3]
        %v239 = vld [vmem:[%s198] sm:$0xff]
        %v240 = vld [vmem:[%s198 + $0x8] sm:$0xff]
        %v241 = vld [vmem:[%s198 + $0x10] sm:$0xff]
        %v242 = vld [vmem:[%s198 + $0x18] sm:$0xff]
        %v243 = vld [vmem:[%s198 + $0x20] sm:$0xff]
        %v244 = vld [vmem:[%s198 + $0x28] sm:$0xff]
        %v245 = vld [vmem:[%s198 + $0x30] sm:$0xff]
        %v246 = vld [vmem:[%s198 + $0x38] sm:$0xff]
        %v247 = vld [vmem:[%s198 + $0x40] sm:$0xff]
        %v248 = vld [vmem:[%s198 + $0x48] sm:$0xff]
        %v249 = vld [vmem:[%s198 + $0x50] sm:$0xff]
        %v250 = vld [vmem:[%s198 + $0x58] sm:$0xff]
        %v251 = vld [vmem:[%s198 + $0x60] sm:$0xff]
        %v252 = vld [vmem:[%s198 + $0x68] sm:$0xff]
        %v253 = vld [vmem:[%s198 + $0x70] sm:$0xff]
        %v254 = vld [vmem:[%s198 + $0x78] sm:$0xff]
        %v255 = vld [vmem:[%s198 + $0x80] sm:$0xff]
        %v256 = vld [vmem:[%s198 + $0x88] sm:$0xff]
        %v257 = vld [vmem:[%s198 + $0x90] sm:$0xff]
        %v258 = vld [vmem:[%s198 + $0x98] sm:$0xff]
        %v259 = vld [vmem:[%s198 + $0xa0] sm:$0xff]
        %v260 = vld [vmem:[%s198 + $0xa8] sm:$0xff]
        %v261 = vld [vmem:[%s198 + $0xb0] sm:$0xff]
        %v262 = vld [vmem:[%s198 + $0xb8] sm:$0xff]
        %v263 = vld [vmem:[%s198 + $0xc0] sm:$0xff]
        %v264 = vld [vmem:[%s198 + $0xc8] sm:$0xff]
        %v265 = vld [vmem:[%s198 + $0xd0] sm:$0xff]
        %v266 = vld [vmem:[%s198 + $0xd8] sm:$0xff]
        %v267 = vld [vmem:[%s198 + $0xe0] sm:$0xff]
        %v268 = vld [vmem:[%s198 + $0xe8] sm:$0xff]
        %v269 = vld [vmem:[%s198 + $0xf0] sm:$0xff]
        %v270 = vld [vmem:[%s198 + $0xf8] sm:$0xff]
        %v271 = vld [vmem:[%s198 + $0x100] sm:$0xff]
        %v272 = vld [vmem:[%s198 + $0x108] sm:$0xff]
        %v273 = vld [vmem:[%s198 + $0x110] sm:$0xff]
        %v274 = vld [vmem:[%s198 + $0x118] sm:$0xff]
        %v275 = vld [vmem:[%s198 + $0x120] sm:$0xff]
        %v276 = vld [vmem:[%s198 + $0x128] sm:$0xff]
        %v277 = vld [vmem:[%s198 + $0x130] sm:$0xff]
        %v278 = vld [vmem:[%s198 + $0x138] sm:$0xff]
        %v279 = vld [vmem:[%s198 + $0x140] sm:$0xff]
        %v280 = vld [vmem:[%s198 + $0x148] sm:$0xff]
        %v281 = vld [vmem:[%s198 + $0x150] sm:$0xff]
        %v282 = vld [vmem:[%s198 + $0x158] sm:$0xff]
        %v283 = vld [vmem:[%s198 + $0x160] sm:$0xff]
        %v284 = vld [vmem:[%s198 + $0x168] sm:$0xff]
        %v285 = vld [vmem:[%s198 + $0x170] sm:$0xff]
        %v286 = vld [vmem:[%s198 + $0x178] sm:$0xff]
        %v287 = vld [vmem:[%s198 + $0x180] sm:$0xff]
        %v288 = vld [vmem:[%s198 + $0x188] sm:$0xff]
        %v289 = vld [vmem:[%s198 + $0x190] sm:$0xff]
        %v290 = vld [vmem:[%s198 + $0x198] sm:$0xff]
        %v291 = vld [vmem:[%s198 + $0x1a0] sm:$0xff]
        %v292 = vld [vmem:[%s198 + $0x1a8] sm:$0xff]
        %v293 = vld [vmem:[%s198 + $0x1b0] sm:$0xff]
        %v294 = vld [vmem:[%s198 + $0x1b8] sm:$0xff]
        %v295 = vld [vmem:[%s198 + $0x1c0] sm:$0xff]
        %v296 = vld [vmem:[%s198 + $0x1c8] sm:$0xff]
        %v297 = vld [vmem:[%s198 + $0x1d0] sm:$0xff]
        %v298 = vld [vmem:[%s198 + $0x1d8] sm:$0xff]
        %v299 = vld [vmem:[%s198 + $0x1e0] sm:$0xff]
        %v300 = vld [vmem:[%s198 + $0x1e8] sm:$0xff]
        %v301 = vld [vmem:[%s198 + $0x1f0] sm:$0xff]
        %v302 = vld [vmem:[%s198 + $0x1f8] sm:$0xff]
        %v303 = vld [vmem:[%s207] sm:$0xff]
        %v304 = vld [vmem:[%s207 + $0x8] sm:$0xff]
        %v305 = vld [vmem:[%s207 + $0x10] sm:$0xff]
        %v306 = vld [vmem:[%s207 + $0x18] sm:$0xff]
        %v307 = vld [vmem:[%s207 + $0x20] sm:$0xff]
        %v308 = vld [vmem:[%s207 + $0x28] sm:$0xff]
        %v309 = vld [vmem:[%s207 + $0x30] sm:$0xff]
        %v310 = vld [vmem:[%s207 + $0x38] sm:$0xff]
        %v319 = vlaneseq
        %v320 = vshrl.u32 %v319, 7
        %v321 = vsub.s32 0, %v320
        %v322 = vrot.slane %v303, %v321
        %v323 = vlaneseq
        %v324 = vshrl.u32 %v323, 7
        %v325 = vsub.s32 1, %v324
        %v326 = vrot.slane %v303, %v325
        %v327 = vlaneseq
        %v328 = vshrl.u32 %v327, 7
        %v329 = vsub.s32 2, %v328
        %v330 = vrot.slane %v303, %v329
        %v331 = vlaneseq
        %v332 = vshrl.u32 %v331, 7
        %v333 = vsub.s32 3, %v332
        %v334 = vrot.slane %v303, %v333
        %v335 = vlaneseq
        %v336 = vshrl.u32 %v335, 7
        %v337 = vsub.s32 4, %v336
        %v338 = vrot.slane %v303, %v337
        %v339 = vlaneseq
        %v340 = vshrl.u32 %v339, 7
        %v341 = vsub.s32 5, %v340
        %v342 = vrot.slane %v303, %v341
        %v343 = vlaneseq
        %v344 = vshrl.u32 %v343, 7
        %v345 = vsub.s32 6, %v344
        %v346 = vrot.slane %v303, %v345
        %v347 = vlaneseq
        %v348 = vshrl.u32 %v347, 7
        %v349 = vsub.s32 7, %v348
        %v350 = vrot.slane %v303, %v349
        %v351 = vlaneseq
        %v352 = vshrl.u32 %v351, 7
        %v353 = vsub.s32 0, %v352
        %v354 = vrot.slane %v304, %v353
        %v355 = vlaneseq
        %v356 = vshrl.u32 %v355, 7
        %v357 = vsub.s32 1, %v356
        %v358 = vrot.slane %v304, %v357
        %v359 = vlaneseq
        %v360 = vshrl.u32 %v359, 7
        %v361 = vsub.s32 2, %v360
        %v362 = vrot.slane %v304, %v361
        %v363 = vlaneseq
        %v364 = vshrl.u32 %v363, 7
        %v365 = vsub.s32 3, %v364
        %v366 = vrot.slane %v304, %v365
        %v367 = vlaneseq
        %v368 = vshrl.u32 %v367, 7
        %v369 = vsub.s32 4, %v368
        %v370 = vrot.slane %v304, %v369
        %v371 = vlaneseq
        %v372 = vshrl.u32 %v371, 7
        %v373 = vsub.s32 5, %v372
        %v374 = vrot.slane %v304, %v373
        %v375 = vlaneseq
        %v376 = vshrl.u32 %v375, 7
        %v377 = vsub.s32 6, %v376
        %v378 = vrot.slane %v304, %v377
        %v379 = vlaneseq
        %v380 = vshrl.u32 %v379, 7
        %v381 = vsub.s32 7, %v380
        %v382 = vrot.slane %v304, %v381
        %v383 = vlaneseq
        %v384 = vshrl.u32 %v383, 7
        %v385 = vsub.s32 0, %v384
        %v386 = vrot.slane %v305, %v385
        %v387 = vlaneseq
        %v388 = vshrl.u32 %v387, 7
        %v389 = vsub.s32 1, %v388
        %v390 = vrot.slane %v305, %v389
        %v391 = vlaneseq
        %v392 = vshrl.u32 %v391, 7
        %v393 = vsub.s32 2, %v392
        %v394 = vrot.slane %v305, %v393
        %v395 = vlaneseq
        %v396 = vshrl.u32 %v395, 7
        %v397 = vsub.s32 3, %v396
        %v398 = vrot.slane %v305, %v397
        %v399 = vlaneseq
        %v400 = vshrl.u32 %v399, 7
        %v401 = vsub.s32 4, %v400
        %v402 = vrot.slane %v305, %v401
        %v403 = vlaneseq
        %v404 = vshrl.u32 %v403, 7
        %v405 = vsub.s32 5, %v404
        %v406 = vrot.slane %v305, %v405
        %v407 = vlaneseq
        %v408 = vshrl.u32 %v407, 7
        %v409 = vsub.s32 6, %v408
        %v410 = vrot.slane %v305, %v409
        %v411 = vlaneseq
        %v412 = vshrl.u32 %v411, 7
        %v413 = vsub.s32 7, %v412
        %v414 = vrot.slane %v305, %v413
        %v415 = vlaneseq
        %v416 = vshrl.u32 %v415, 7
        %v417 = vsub.s32 0, %v416
        %v418 = vrot.slane %v306, %v417
        %v419 = vlaneseq
        %v420 = vshrl.u32 %v419, 7
        %v421 = vsub.s32 1, %v420
        %v422 = vrot.slane %v306, %v421
        %v423 = vlaneseq
        %v424 = vshrl.u32 %v423, 7
        %v425 = vsub.s32 2, %v424
        %v426 = vrot.slane %v306, %v425
        %v427 = vlaneseq
        %v428 = vshrl.u32 %v427, 7
        %v429 = vsub.s32 3, %v428
        %v430 = vrot.slane %v306, %v429
        %v431 = vlaneseq
        %v432 = vshrl.u32 %v431, 7
        %v433 = vsub.s32 4, %v432
        %v434 = vrot.slane %v306, %v433
        %v435 = vlaneseq
        %v436 = vshrl.u32 %v435, 7
        %v437 = vsub.s32 5, %v436
        %v438 = vrot.slane %v306, %v437
        %v439 = vlaneseq
        %v440 = vshrl.u32 %v439, 7
        %v441 = vsub.s32 6, %v440
        %v442 = vrot.slane %v306, %v441
        %v443 = vlaneseq
        %v444 = vshrl.u32 %v443, 7
        %v445 = vsub.s32 7, %v444
        %v446 = vrot.slane %v306, %v445
        %v447 = vlaneseq
        %v448 = vshrl.u32 %v447, 7
        %v449 = vsub.s32 0, %v448
        %v450 = vrot.slane %v307, %v449
        %v451 = vlaneseq
        %v452 = vshrl.u32 %v451, 7
        %v453 = vsub.s32 1, %v452
        %v454 = vrot.slane %v307, %v453
        %v455 = vlaneseq
        %v456 = vshrl.u32 %v455, 7
        %v457 = vsub.s32 2, %v456
        %v458 = vrot.slane %v307, %v457
        %v459 = vlaneseq
        %v460 = vshrl.u32 %v459, 7
        %v461 = vsub.s32 3, %v460
        %v462 = vrot.slane %v307, %v461
        %v463 = vlaneseq
        %v464 = vshrl.u32 %v463, 7
        %v465 = vsub.s32 4, %v464
        %v466 = vrot.slane %v307, %v465
        %v467 = vlaneseq
        %v468 = vshrl.u32 %v467, 7
        %v469 = vsub.s32 5, %v468
        %v470 = vrot.slane %v307, %v469
        %v471 = vlaneseq
        %v472 = vshrl.u32 %v471, 7
        %v473 = vsub.s32 6, %v472
        %v474 = vrot.slane %v307, %v473
        %v475 = vlaneseq
        %v476 = vshrl.u32 %v475, 7
        %v477 = vsub.s32 7, %v476
        %v478 = vrot.slane %v307, %v477
        %v479 = vlaneseq
        %v480 = vshrl.u32 %v479, 7
        %v481 = vsub.s32 0, %v480
        %v482 = vrot.slane %v308, %v481
        %v483 = vlaneseq
        %v484 = vshrl.u32 %v483, 7
        %v485 = vsub.s32 1, %v484
        %v486 = vrot.slane %v308, %v485
        %v487 = vlaneseq
        %v488 = vshrl.u32 %v487, 7
        %v489 = vsub.s32 2, %v488
        %v490 = vrot.slane %v308, %v489
        %v491 = vlaneseq
        %v492 = vshrl.u32 %v491, 7
        %v493 = vsub.s32 3, %v492
        %v494 = vrot.slane %v308, %v493
        %v495 = vlaneseq
        %v496 = vshrl.u32 %v495, 7
        %v497 = vsub.s32 4, %v496
        %v498 = vrot.slane %v308, %v497
        %v499 = vlaneseq
        %v500 = vshrl.u32 %v499, 7
        %v501 = vsub.s32 5, %v500
        %v502 = vrot.slane %v308, %v501
        %v503 = vlaneseq
        %v504 = vshrl.u32 %v503, 7
        %v505 = vsub.s32 6, %v504
        %v506 = vrot.slane %v308, %v505
        %v507 = vlaneseq
        %v508 = vshrl.u32 %v507, 7
        %v509 = vsub.s32 7, %v508
        %v510 = vrot.slane %v308, %v509
        %v511 = vlaneseq
        %v512 = vshrl.u32 %v511, 7
        %v513 = vsub.s32 0, %v512
        %v514 = vrot.slane %v309, %v513
        %v515 = vlaneseq
        %v516 = vshrl.u32 %v515, 7
        %v517 = vsub.s32 1, %v516
        %v518 = vrot.slane %v309, %v517
        %v519 = vlaneseq
        %v520 = vshrl.u32 %v519, 7
        %v521 = vsub.s32 2, %v520
        %v522 = vrot.slane %v309, %v521
        %v523 = vlaneseq
        %v524 = vshrl.u32 %v523, 7
        %v525 = vsub.s32 3, %v524
        %v526 = vrot.slane %v309, %v525
        %v527 = vlaneseq
        %v528 = vshrl.u32 %v527, 7
        %v529 = vsub.s32 4, %v528
        %v530 = vrot.slane %v309, %v529
        %v531 = vlaneseq
        %v532 = vshrl.u32 %v531, 7
        %v533 = vsub.s32 5, %v532
        %v534 = vrot.slane %v309, %v533
        %v535 = vlaneseq
        %v536 = vshrl.u32 %v535, 7
        %v537 = vsub.s32 6, %v536
        %v538 = vrot.slane %v309, %v537
        %v539 = vlaneseq
        %v540 = vshrl.u32 %v539, 7
        %v541 = vsub.s32 7, %v540
        %v542 = vrot.slane %v309, %v541
        %v543 = vlaneseq
        %v544 = vshrl.u32 %v543, 7
        %v545 = vsub.s32 0, %v544
        %v546 = vrot.slane %v310, %v545
        %v547 = vlaneseq
        %v548 = vshrl.u32 %v547, 7
        %v549 = vsub.s32 1, %v548
        %v550 = vrot.slane %v310, %v549
        %v551 = vlaneseq
        %v552 = vshrl.u32 %v551, 7
        %v553 = vsub.s32 2, %v552
        %v554 = vrot.slane %v310, %v553
        %v555 = vlaneseq
        %v556 = vshrl.u32 %v555, 7
        %v557 = vsub.s32 3, %v556
        %v558 = vrot.slane %v310, %v557
        %v559 = vlaneseq
        %v560 = vshrl.u32 %v559, 7
        %v561 = vsub.s32 4, %v560
        %v562 = vrot.slane %v310, %v561
        %v563 = vlaneseq
        %v564 = vshrl.u32 %v563, 7
        %v565 = vsub.s32 5, %v564
        %v566 = vrot.slane %v310, %v565
        %v567 = vlaneseq
        %v568 = vshrl.u32 %v567, 7
        %v569 = vsub.s32 6, %v568
        %v570 = vrot.slane %v310, %v569
        %v571 = vlaneseq
        %v572 = vshrl.u32 %v571, 7
        %v573 = vsub.s32 7, %v572
        %v574 = vrot.slane %v310, %v573
        %vm639 = vcmask 64512
        %v641 = vsel %vm639, %v238, 0
        %643 = vmatprep.subr.mxu0 %v240
        %644 = vmatpush1.msra.mxu0 %v239
        %645 = vmatprep.subr.mxu0 0.0
        %646 = vmatpush1.msra.mxu0 0.0
        %647 = vmatprep.subr.mxu0 0.0
        %648 = vmatpush1.msra.mxu0 0.0
        %649 = vmatprep.subr.mxu0 0.0
        %650 = vmatpush1.msra.mxu0 0.0
        %651 = vmatprep.subr.mxu0 0.0
        %652 = vmatpush1.msra.mxu0 0.0
        %653 = vmatprep.subr.mxu0 0.0
        %654 = vmatpush1.msra.mxu0 0.0
        %655 = vmatprep.subr.mxu0 0.0
        %656 = vmatpush1.msra.mxu0 0.0
        %657 = vmatprep.subr.mxu0 0.0
        %658 = vmatpush1.msra.mxu0 0.0
        %659 = vmatprep.subr.mxu0 0.0
        %660 = vmatpush1.msra.mxu0 0.0
        %661 = vmatprep.subr.mxu0 0.0
        %662 = vmatpush1.msra.mxu0 0.0
        %663 = vmatprep.subr.mxu0 0.0
        %664 = vmatpush1.msra.mxu0 0.0
        %665 = vmatprep.subr.mxu0 0.0
        %666 = vmatpush1.msra.mxu0 0.0
        %667 = vmatprep.subr.mxu0 0.0
        %668 = vmatpush1.msra.mxu0 0.0
        %669 = vmatprep.subr.mxu0 0.0
        %670 = vmatpush1.msra.mxu0 0.0
        %671 = vmatprep.subr.mxu0 0.0
        %672 = vmatpush1.msra.mxu0 0.0
        %673 = vmatprep.subr.mxu0 0.0
        %674 = vmatpush1.msra.mxu0 0.0
        %675 = vmatprep.subr.mxu0 0.0
        %676 = vmatpush1.msra.mxu0 0.0
        %677 = vmatprep.subr.mxu0 0.0
        %678 = vmatpush1.msra.mxu0 0.0
        %679 = vmatprep.subr.mxu0 0.0
        %680 = vmatpush1.msra.mxu0 0.0
        %681 = vmatprep.subr.mxu0 0.0
        %682 = vmatpush1.msra.mxu0 0.0
        %683 = vmatprep.subr.mxu0 0.0
        %684 = vmatpush1.msra.mxu0 0.0
        %685 = vmatprep.subr.mxu0 0.0
        %686 = vmatpush1.msra.mxu0 0.0
        %687 = vmatprep.subr.mxu0 0.0
        %688 = vmatpush1.msra.mxu0 0.0
        %689 = vmatprep.subr.mxu0 0.0
        %690 = vmatpush1.msra.mxu0 0.0
        %691 = vmatprep.subr.mxu0 0.0
        %692 = vmatpush1.msra.mxu0 0.0
        %693 = vmatprep.subr.mxu0 0.0
        %694 = vmatpush1.msra.mxu0 0.0
        %695 = vmatprep.subr.mxu0 0.0
        %696 = vmatpush1.msra.mxu0 0.0
        %697 = vmatprep.subr.mxu0 0.0
        %698 = vmatpush1.msra.mxu0 0.0
        %699 = vmatprep.subr.mxu0 0.0
        %700 = vmatpush1.msra.mxu0 0.0
        %701 = vmatprep.subr.mxu0 0.0
        %702 = vmatpush1.msra.mxu0 0.0
        %703 = vmatprep.subr.mxu0 0.0
        %704 = vmatpush1.msra.mxu0 0.0
        %705 = vmatprep.subr.mxu0 0.0
        %706 = vmatpush1.msra.mxu0 0.0
        %707 = vmatprep.mubr.f32.mxu0 0.0
        %708 = vmatmul.mubr.f32.gmra.mrb[0].mxu0 %v641
        %v709 = vpop.f32.mrb[0].mxu0
        %v710 = vadd.f32 %v322, %v709
        %v711 = vpop.f32.mrb[0].mxu0
        %v712 = vadd.f32 %v326, %v711
        %713 = vdwg.mxu0
        %714 = vmatprep.subr.mxu0 %v242
        %715 = vmatpush1.msra.mxu0 %v241
        %716 = vmatprep.subr.mxu0 0.0
        %717 = vmatpush1.msra.mxu0 0.0
        %718 = vmatprep.subr.mxu0 0.0
        %719 = vmatpush1.msra.mxu0 0.0
        %720 = vmatprep.subr.mxu0 0.0
        %721 = vmatpush1.msra.mxu0 0.0
        %722 = vmatprep.subr.mxu0 0.0
        %723 = vmatpush1.msra.mxu0 0.0
        %724 = vmatprep.subr.mxu0 0.0
        %725 = vmatpush1.msra.mxu0 0.0
        %726 = vmatprep.subr.mxu0 0.0
        %727 = vmatpush1.msra.mxu0 0.0
        %728 = vmatprep.subr.mxu0 0.0
        %729 = vmatpush1.msra.mxu0 0.0
        %730 = vmatprep.subr.mxu0 0.0
        %731 = vmatpush1.msra.mxu0 0.0
        %732 = vmatprep.subr.mxu0 0.0
        %733 = vmatpush1.msra.mxu0 0.0
        %734 = vmatprep.subr.mxu0 0.0
        %735 = vmatpush1.msra.mxu0 0.0
        %736 = vmatprep.subr.mxu0 0.0
        %737 = vmatpush1.msra.mxu0 0.0
        %738 = vmatprep.subr.mxu0 0.0
        %739 = vmatpush1.msra.mxu0 0.0
        %740 = vmatprep.subr.mxu0 0.0
        %741 = vmatpush1.msra.mxu0 0.0
        %742 = vmatprep.subr.mxu0 0.0
        %743 = vmatpush1.msra.mxu0 0.0
        %744 = vmatprep.subr.mxu0 0.0
        %745 = vmatpush1.msra.mxu0 0.0
        %746 = vmatprep.subr.mxu0 0.0
        %747 = vmatpush1.msra.mxu0 0.0
        %748 = vmatprep.subr.mxu0 0.0
        %749 = vmatpush1.msra.mxu0 0.0
        %750 = vmatprep.subr.mxu0 0.0
        %751 = vmatpush1.msra.mxu0 0.0
        %752 = vmatprep.subr.mxu0 0.0
        %753 = vmatpush1.msra.mxu0 0.0
        %754 = vmatprep.subr.mxu0 0.0
        %755 = vmatpush1.msra.mxu0 0.0
        %756 = vmatprep.subr.mxu0 0.0
        %757 = vmatpush1.msra.mxu0 0.0
        %758 = vmatprep.subr.mxu0 0.0
        %759 = vmatpush1.msra.mxu0 0.0
        %760 = vmatprep.subr.mxu0 0.0
        %761 = vmatpush1.msra.mxu0 0.0
        %762 = vmatprep.subr.mxu0 0.0
        %763 = vmatpush1.msra.mxu0 0.0
        %764 = vmatprep.subr.mxu0 0.0
        %765 = vmatpush1.msra.mxu0 0.0
        %766 = vmatprep.subr.mxu0 0.0
        %767 = vmatpush1.msra.mxu0 0.0
        %768 = vmatprep.subr.mxu0 0.0
        %769 = vmatpush1.msra.mxu0 0.0
        %770 = vmatprep.subr.mxu0 0.0
        %771 = vmatpush1.msra.mxu0 0.0
        %772 = vmatprep.subr.mxu0 0.0
        %773 = vmatpush1.msra.mxu0 0.0
        %774 = vmatprep.subr.mxu0 0.0
        %775 = vmatpush1.msra.mxu0 0.0
        %776 = vmatprep.subr.mxu0 0.0
        %777 = vmatpush1.msra.mxu0 0.0
        %778 = vmatprep.mubr.f32.mxu0 0.0
        %779 = vmatmul.mubr.f32.gmra.mrb[0].mxu0 %v641
        %v780 = vpop.f32.mrb[0].mxu0
        %v781 = vadd.f32 %v330, %v780
        %v782 = vpop.f32.mrb[0].mxu0
        %v783 = vadd.f32 %v334, %v782
        %784 = vdwg.mxu0
        %785 = vmatprep.subr.mxu0 %v244
        %786 = vmatpush1.msra.mxu0 %v243
        %787 = vmatprep.subr.mxu0 0.0
        %788 = vmatpush1.msra.mxu0 0.0
        %789 = vmatprep.subr.mxu0 0.0
        %790 = vmatpush1.msra.mxu0 0.0
        %791 = vmatprep.subr.mxu0 0.0
        %792 = vmatpush1.msra.mxu0 0.0
        %793 = vmatprep.subr.mxu0 0.0
        %794 = vmatpush1.msra.mxu0 0.0
        %795 = vmatprep.subr.mxu0 0.0
        %796 = vmatpush1.msra.mxu0 0.0
        %797 = vmatprep.subr.mxu0 0.0
        %798 = vmatpush1.msra.mxu0 0.0
        %799 = vmatprep.subr.mxu0 0.0
        %800 = vmatpush1.msra.mxu0 0.0
        %801 = vmatprep.subr.mxu0 0.0
        %802 = vmatpush1.msra.mxu0 0.0
        %803 = vmatprep.subr.mxu0 0.0
        %804 = vmatpush1.msra.mxu0 0.0
        %805 = vmatprep.subr.mxu0 0.0
        %806 = vmatpush1.msra.mxu0 0.0
        %807 = vmatprep.subr.mxu0 0.0
        %808 = vmatpush1.msra.mxu0 0.0
        %809 = vmatprep.subr.mxu0 0.0
        %810 = vmatpush1.msra.mxu0 0.0
        %811 = vmatprep.subr.mxu0 0.0
        %812 = vmatpush1.msra.mxu0 0.0
        %813 = vmatprep.subr.mxu0 0.0
        %814 = vmatpush1.msra.mxu0 0.0
        %815 = vmatprep.subr.mxu0 0.0
        %816 = vmatpush1.msra.mxu0 0.0
        %817 = vmatprep.subr.mxu0 0.0
        %818 = vmatpush1.msra.mxu0 0.0
        %819 = vmatprep.subr.mxu0 0.0
        %820 = vmatpush1.msra.mxu0 0.0
        %821 = vmatprep.subr.mxu0 0.0
        %822 = vmatpush1.msra.mxu0 0.0
        %823 = vmatprep.subr.mxu0 0.0
        %824 = vmatpush1.msra.mxu0 0.0
        %825 = vmatprep.subr.mxu0 0.0
        %826 = vmatpush1.msra.mxu0 0.0
        %827 = vmatprep.subr.mxu0 0.0
        %828 = vmatpush1.msra.mxu0 0.0
        %829 = vmatprep.subr.mxu0 0.0
        %830 = vmatpush1.msra.mxu0 0.0
        %831 = vmatprep.subr.mxu0 0.0
        %832 = vmatpush1.msra.mxu0 0.0
        %833 = vmatprep.subr.mxu0 0.0
        %834 = vmatpush1.msra.mxu0 0.0
        %835 = vmatprep.subr.mxu0 0.0
        %836 = vmatpush1.msra.mxu0 0.0
        %837 = vmatprep.subr.mxu0 0.0
        %838 = vmatpush1.msra.mxu0 0.0
        %839 = vmatprep.subr.mxu0 0.0
        %840 = vmatpush1.msra.mxu0 0.0
        %841 = vmatprep.subr.mxu0 0.0
        %842 = vmatpush1.msra.mxu0 0.0
        %843 = vmatprep.subr.mxu0 0.0
        %844 = vmatpush1.msra.mxu0 0.0
        %845 = vmatprep.subr.mxu0 0.0
        %846 = vmatpush1.msra.mxu0 0.0
        %847 = vmatprep.subr.mxu0 0.0
        %848 = vmatpush1.msra.mxu0 0.0
        %849 = vmatprep.mubr.f32.mxu0 0.0
        %850 = vmatmul.mubr.f32.gmra.mrb[0].mxu0 %v641
        %v851 = vpop.f32.mrb[0].mxu0
        %v852 = vadd.f32 %v338, %v851
        %v853 = vpop.f32.mrb[0].mxu0
        %v854 = vadd.f32 %v342, %v853
        %855 = vdwg.mxu0
        %856 = vmatprep.subr.mxu0 %v246
        %857 = vmatpush1.msra.mxu0 %v245
        %858 = vmatprep.subr.mxu0 0.0
        %859 = vmatpush1.msra.mxu0 0.0
        %860 = vmatprep.subr.mxu0 0.0
        %861 = vmatpush1.msra.mxu0 0.0
        %862 = vmatprep.subr.mxu0 0.0
        %863 = vmatpush1.msra.mxu0 0.0
        %864 = vmatprep.subr.mxu0 0.0
        %865 = vmatpush1.msra.mxu0 0.0
        %866 = vmatprep.subr.mxu0 0.0
        %867 = vmatpush1.msra.mxu0 0.0
        %868 = vmatprep.subr.mxu0 0.0
        %869 = vmatpush1.msra.mxu0 0.0
        %870 = vmatprep.subr.mxu0 0.0
        %871 = vmatpush1.msra.mxu0 0.0
        %872 = vmatprep.subr.mxu0 0.0
        %873 = vmatpush1.msra.mxu0 0.0
        %874 = vmatprep.subr.mxu0 0.0
        %875 = vmatpush1.msra.mxu0 0.0
        %876 = vmatprep.subr.mxu0 0.0
        %877 = vmatpush1.msra.mxu0 0.0
        %878 = vmatprep.subr.mxu0 0.0
        %879 = vmatpush1.msra.mxu0 0.0
        %880 = vmatprep.subr.mxu0 0.0
        %881 = vmatpush1.msra.mxu0 0.0
        %882 = vmatprep.subr.mxu0 0.0
        %883 = vmatpush1.msra.mxu0 0.0
        %884 = vmatprep.subr.mxu0 0.0
        %885 = vmatpush1.msra.mxu0 0.0
        %886 = vmatprep.subr.mxu0 0.0
        %887 = vmatpush1.msra.mxu0 0.0
        %888 = vmatprep.subr.mxu0 0.0
        %889 = vmatpush1.msra.mxu0 0.0
        %890 = vmatprep.subr.mxu0 0.0
        %891 = vmatpush1.msra.mxu0 0.0
        %892 = vmatprep.subr.mxu0 0.0
        %893 = vmatpush1.msra.mxu0 0.0
        %894 = vmatprep.subr.mxu0 0.0
        %895 = vmatpush1.msra.mxu0 0.0
        %896 = vmatprep.subr.mxu0 0.0
        %897 = vmatpush1.msra.mxu0 0.0
        %898 = vmatprep.subr.mxu0 0.0
        %899 = vmatpush1.msra.mxu0 0.0
        %900 = vmatprep.subr.mxu0 0.0
        %901 = vmatpush1.msra.mxu0 0.0
        %902 = vmatprep.subr.mxu0 0.0
        %903 = vmatpush1.msra.mxu0 0.0
        %904 = vmatprep.subr.mxu0 0.0
        %905 = vmatpush1.msra.mxu0 0.0
        %906 = vmatprep.subr.mxu0 0.0
        %907 = vmatpush1.msra.mxu0 0.0
        %908 = vmatprep.subr.mxu0 0.0
        %909 = vmatpush1.msra.mxu0 0.0
        %910 = vmatprep.subr.mxu0 0.0
        %911 = vmatpush1.msra.mxu0 0.0
        %912 = vmatprep.subr.mxu0 0.0
        %913 = vmatpush1.msra.mxu0 0.0
        %914 = vmatprep.subr.mxu0 0.0
        %915 = vmatpush1.msra.mxu0 0.0
        %916 = vmatprep.subr.mxu0 0.0
        %917 = vmatpush1.msra.mxu0 0.0
        %918 = vmatprep.subr.mxu0 0.0
        %919 = vmatpush1.msra.mxu0 0.0
        %920 = vmatprep.mubr.f32.mxu0 0.0
        %921 = vmatmul.mubr.f32.gmra.mrb[0].mxu0 %v641
        %v922 = vpop.f32.mrb[0].mxu0
        %v923 = vadd.f32 %v346, %v922
        %v924 = vpop.f32.mrb[0].mxu0
        %v925 = vadd.f32 %v350, %v924
        %926 = vdwg.mxu0
        %927 = vmatprep.subr.mxu0 %v248
        %928 = vmatpush1.msra.mxu0 %v247
        %929 = vmatprep.subr.mxu0 0.0
        %930 = vmatpush1.msra.mxu0 0.0
        %931 = vmatprep.subr.mxu0 0.0
        %932 = vmatpush1.msra.mxu0 0.0
        %933 = vmatprep.subr.mxu0 0.0
        %934 = vmatpush1.msra.mxu0 0.0
        %935 = vmatprep.subr.mxu0 0.0
        %936 = vmatpush1.msra.mxu0 0.0
        %937 = vmatprep.subr.mxu0 0.0
        %938 = vmatpush1.msra.mxu0 0.0
        %939 = vmatprep.subr.mxu0 0.0
        %940 = vmatpush1.msra.mxu0 0.0
        %941 = vmatprep.subr.mxu0 0.0
        %942 = vmatpush1.msra.mxu0 0.0
        %943 = vmatprep.subr.mxu0 0.0
        %944 = vmatpush1.msra.mxu0 0.0
        %945 = vmatprep.subr.mxu0 0.0
        %946 = vmatpush1.msra.mxu0 0.0
        %947 = vmatprep.subr.mxu0 0.0
        %948 = vmatpush1.msra.mxu0 0.0
        %949 = vmatprep.subr.mxu0 0.0
        %950 = vmatpush1.msra.mxu0 0.0
        %951 = vmatprep.subr.mxu0 0.0
        %952 = vmatpush1.msra.mxu0 0.0
        %953 = vmatprep.subr.mxu0 0.0
        %954 = vmatpush1.msra.mxu0 0.0
        %955 = vmatprep.subr.mxu0 0.0
        %956 = vmatpush1.msra.mxu0 0.0
        %957 = vmatprep.subr.mxu0 0.0
        %958 = vmatpush1.msra.mxu0 0.0
        %959 = vmatprep.subr.mxu0 0.0
        %960 = vmatpush1.msra.mxu0 0.0
        %961 = vmatprep.subr.mxu0 0.0
        %962 = vmatpush1.msra.mxu0 0.0
        %963 = vmatprep.subr.mxu0 0.0
        %964 = vmatpush1.msra.mxu0 0.0
        %965 = vmatprep.subr.mxu0 0.0
        %966 = vmatpush1.msra.mxu0 0.0
        %967 = vmatprep.subr.mxu0 0.0
        %968 = vmatpush1.msra.mxu0 0.0
        %969 = vmatprep.subr.mxu0 0.0
        %970 = vmatpush1.msra.mxu0 0.0
        %971 = vmatprep.subr.mxu0 0.0
        %972 = vmatpush1.msra.mxu0 0.0
        %973 = vmatprep.subr.mxu0 0.0
        %974 = vmatpush1.msra.mxu0 0.0
        %975 = vmatprep.subr.mxu0 0.0
        %976 = vmatpush1.msra.mxu0 0.0
        %977 = vmatprep.subr.mxu0 0.0
        %978 = vmatpush1.msra.mxu0 0.0
        %979 = vmatprep.subr.mxu0 0.0
        %980 = vmatpush1.msra.mxu0 0.0
        %981 = vmatprep.subr.mxu0 0.0
        %982 = vmatpush1.msra.mxu0 0.0
        %983 = vmatprep.subr.mxu0 0.0
        %984 = vmatpush1.msra.mxu0 0.0
        %985 = vmatprep.subr.mxu0 0.0
        %986 = vmatpush1.msra.mxu0 0.0
        %987 = vmatprep.subr.mxu0 0.0
        %988 = vmatpush1.msra.mxu0 0.0
        %989 = vmatprep.subr.mxu0 0.0
        %990 = vmatpush1.msra.mxu0 0.0
        %991 = vmatprep.mubr.f32.mxu0 0.0
        %992 = vmatmul.mubr.f32.gmra.mrb[0].mxu0 %v641
        %v993 = vpop.f32.mrb[0].mxu0
        %v994 = vadd.f32 %v354, %v993
        %v995 = vpop.f32.mrb[0].mxu0
        %v996 = vadd.f32 %v358, %v995
        %997 = vdwg.mxu0
        %998 = vmatprep.subr.mxu0 %v250
        %999 = vmatpush1.msra.mxu0 %v249
        %1000 = vmatprep.subr.mxu0 0.0
        %1001 = vmatpush1.msra.mxu0 0.0
        %1002 = vmatprep.subr.mxu0 0.0
        %1003 = vmatpush1.msra.mxu0 0.0
        %1004 = vmatprep.subr.mxu0 0.0
        %1005 = vmatpush1.msra.mxu0 0.0
        %1006 = vmatprep.subr.mxu0 0.0
        %1007 = vmatpush1.msra.mxu0 0.0
        %1008 = vmatprep.subr.mxu0 0.0
        %1009 = vmatpush1.msra.mxu0 0.0
        %1010 = vmatprep.subr.mxu0 0.0
        %1011 = vmatpush1.msra.mxu0 0.0
        %1012 = vmatprep.subr.mxu0 0.0
        %1013 = vmatpush1.msra.mxu0 0.0
        %1014 = vmatprep.subr.mxu0 0.0
        %1015 = vmatpush1.msra.mxu0 0.0
        %1016 = vmatprep.subr.mxu0 0.0
        %1017 = vmatpush1.msra.mxu0 0.0
        %1018 = vmatprep.subr.mxu0 0.0
        %1019 = vmatpush1.msra.mxu0 0.0
        %1020 = vmatprep.subr.mxu0 0.0
        %1021 = vmatpush1.msra.mxu0 0.0
        %1022 = vmatprep.subr.mxu0 0.0
        %1023 = vmatpush1.msra.mxu0 0.0
        %1024 = vmatprep.subr.mxu0 0.0
        %1025 = vmatpush1.msra.mxu0 0.0
        %1026 = vmatprep.subr.mxu0 0.0
        %1027 = vmatpush1.msra.mxu0 0.0
        %1028 = vmatprep.subr.mxu0 0.0
        %1029 = vmatpush1.msra.mxu0 0.0
        %1030 = vmatprep.subr.mxu0 0.0
        %1031 = vmatpush1.msra.mxu0 0.0
        %1032 = vmatprep.subr.mxu0 0.0
        %1033 = vmatpush1.msra.mxu0 0.0
        %1034 = vmatprep.subr.mxu0 0.0
        %1035 = vmatpush1.msra.mxu0 0.0
        %1036 = vmatprep.subr.mxu0 0.0
        %1037 = vmatpush1.msra.mxu0 0.0
        %1038 = vmatprep.subr.mxu0 0.0
        %1039 = vmatpush1.msra.mxu0 0.0
        %1040 = vmatprep.subr.mxu0 0.0
        %1041 = vmatpush1.msra.mxu0 0.0
        %1042 = vmatprep.subr.mxu0 0.0
        %1043 = vmatpush1.msra.mxu0 0.0
        %1044 = vmatprep.subr.mxu0 0.0
        %1045 = vmatpush1.msra.mxu0 0.0
        %1046 = vmatprep.subr.mxu0 0.0
        %1047 = vmatpush1.msra.mxu0 0.0
        %1048 = vmatprep.subr.mxu0 0.0
        %1049 = vmatpush1.msra.mxu0 0.0
        %1050 = vmatprep.subr.mxu0 0.0
        %1051 = vmatpush1.msra.mxu0 0.0
        %1052 = vmatprep.subr.mxu0 0.0
        %1053 = vmatpush1.msra.mxu0 0.0
        %1054 = vmatprep.subr.mxu0 0.0
        %1055 = vmatpush1.msra.mxu0 0.0
        %1056 = vmatprep.subr.mxu0 0.0
        %1057 = vmatpush1.msra.mxu0 0.0
        %1058 = vmatprep.subr.mxu0 0.0
        %1059 = vmatpush1.msra.mxu0 0.0
        %1060 = vmatprep.subr.mxu0 0.0
        %1061 = vmatpush1.msra.mxu0 0.0
        %1062 = vmatprep.mubr.f32.mxu0 0.0
        %1063 = vmatmul.mubr.f32.gmra.mrb[0].mxu0 %v641
        %v1064 = vpop.f32.mrb[0].mxu0
        %v1065 = vadd.f32 %v362, %v1064
        %v1066 = vpop.f32.mrb[0].mxu0
        %v1067 = vadd.f32 %v366, %v1066
        %1068 = vdwg.mxu0
        %1069 = vmatprep.subr.mxu0 %v252
        %1070 = vmatpush1.msra.mxu0 %v251
        %1071 = vmatprep.subr.mxu0 0.0
        %1072 = vmatpush1.msra.mxu0 0.0
        %1073 = vmatprep.subr.mxu0 0.0
        %1074 = vmatpush1.msra.mxu0 0.0
        %1075 = vmatprep.subr.mxu0 0.0
        %1076 = vmatpush1.msra.mxu0 0.0
        %1077 = vmatprep.subr.mxu0 0.0
        %1078 = vmatpush1.msra.mxu0 0.0
        %1079 = vmatprep.subr.mxu0 0.0
        %1080 = vmatpush1.msra.mxu0 0.0
        %1081 = vmatprep.subr.mxu0 0.0
        %1082 = vmatpush1.msra.mxu0 0.0
        %1083 = vmatprep.subr.mxu0 0.0
        %1084 = vmatpush1.msra.mxu0 0.0
        %1085 = vmatprep.subr.mxu0 0.0
        %1086 = vmatpush1.msra.mxu0 0.0
        %1087 = vmatprep.subr.mxu0 0.0
        %1088 = vmatpush1.msra.mxu0 0.0
        %1089 = vmatprep.subr.mxu0 0.0
        %1090 = vmatpush1.msra.mxu0 0.0
        %1091 = vmatprep.subr.mxu0 0.0
        %1092 = vmatpush1.msra.mxu0 0.0
        %1093 = vmatprep.subr.mxu0 0.0
        %1094 = vmatpush1.msra.mxu0 0.0
        %1095 = vmatprep.subr.mxu0 0.0
        %1096 = vmatpush1.msra.mxu0 0.0
        %1097 = vmatprep.subr.mxu0 0.0
        %1098 = vmatpush1.msra.mxu0 0.0
        %1099 = vmatprep.subr.mxu0 0.0
        %1100 = vmatpush1.msra.mxu0 0.0
        %1101 = vmatprep.subr.mxu0 0.0
        %1102 = vmatpush1.msra.mxu0 0.0
        %1103 = vmatprep.subr.mxu0 0.0
        %1104 = vmatpush1.msra.mxu0 0.0
        %1105 = vmatprep.subr.mxu0 0.0
        %1106 = vmatpush1.msra.mxu0 0.0
        %1107 = vmatprep.subr.mxu0 0.0
        %1108 = vmatpush1.msra.mxu0 0.0
        %1109 = vmatprep.subr.mxu0 0.0
        %1110 = vmatpush1.msra.mxu0 0.0
        %1111 = vmatprep.subr.mxu0 0.0
        %1112 = vmatpush1.msra.mxu0 0.0
        %1113 = vmatprep.subr.mxu0 0.0
        %1114 = vmatpush1.msra.mxu0 0.0
        %1115 = vmatprep.subr.mxu0 0.0
        %1116 = vmatpush1.msra.mxu0 0.0
        %1117 = vmatprep.subr.mxu0 0.0
        %1118 = vmatpush1.msra.mxu0 0.0
        %1119 = vmatprep.subr.mxu0 0.0
        %1120 = vmatpush1.msra.mxu0 0.0
        %1121 = vmatprep.subr.mxu0 0.0
        %1122 = vmatpush1.msra.mxu0 0.0
        %1123 = vmatprep.subr.mxu0 0.0
        %1124 = vmatpush1.msra.mxu0 0.0
        %1125 = vmatprep.subr.mxu0 0.0
        %1126 = vmatpush1.msra.mxu0 0.0
        %1127 = vmatprep.subr.mxu0 0.0
        %1128 = vmatpush1.msra.mxu0 0.0
        %1129 = vmatprep.subr.mxu0 0.0
        %1130 = vmatpush1.msra.mxu0 0.0
        %1131 = vmatprep.subr.mxu0 0.0
        %1132 = vmatpush1.msra.mxu0 0.0
        %1133 = vmatprep.mubr.f32.mxu0 0.0
        %1134 = vmatmul.mubr.f32.gmra.mrb[0].mxu0 %v641
        %v1135 = vpop.f32.mrb[0].mxu0
        %v1136 = vadd.f32 %v370, %v1135
        %v1137 = vpop.f32.mrb[0].mxu0
        %v1138 = vadd.f32 %v374, %v1137
        %1139 = vdwg.mxu0
        %1140 = vmatprep.subr.mxu0 %v254
        %1141 = vmatpush1.msra.mxu0 %v253
        %1142 = vmatprep.subr.mxu0 0.0
        %1143 = vmatpush1.msra.mxu0 0.0
        %1144 = vmatprep.subr.mxu0 0.0
        %1145 = vmatpush1.msra.mxu0 0.0
        %1146 = vmatprep.subr.mxu0 0.0
        %1147 = vmatpush1.msra.mxu0 0.0
        %1148 = vmatprep.subr.mxu0 0.0
        %1149 = vmatpush1.msra.mxu0 0.0
        %1150 = vmatprep.subr.mxu0 0.0
        %1151 = vmatpush1.msra.mxu0 0.0
        %1152 = vmatprep.subr.mxu0 0.0
        %1153 = vmatpush1.msra.mxu0 0.0
        %1154 = vmatprep.subr.mxu0 0.0
        %1155 = vmatpush1.msra.mxu0 0.0
        %1156 = vmatprep.subr.mxu0 0.0
        %1157 = vmatpush1.msra.mxu0 0.0
        %1158 = vmatprep.subr.mxu0 0.0
        %1159 = vmatpush1.msra.mxu0 0.0
        %1160 = vmatprep.subr.mxu0 0.0
        %1161 = vmatpush1.msra.mxu0 0.0
        %1162 = vmatprep.subr.mxu0 0.0
        %1163 = vmatpush1.msra.mxu0 0.0
        %1164 = vmatprep.subr.mxu0 0.0
        %1165 = vmatpush1.msra.mxu0 0.0
        %1166 = vmatprep.subr.mxu0 0.0
        %1167 = vmatpush1.msra.mxu0 0.0
        %1168 = vmatprep.subr.mxu0 0.0
        %1169 = vmatpush1.msra.mxu0 0.0
        %1170 = vmatprep.subr.mxu0 0.0
        %1171 = vmatpush1.msra.mxu0 0.0
        %1172 = vmatprep.subr.mxu0 0.0
        %1173 = vmatpush1.msra.mxu0 0.0
        %1174 = vmatprep.subr.mxu0 0.0
        %1175 = vmatpush1.msra.mxu0 0.0
        %1176 = vmatprep.subr.mxu0 0.0
        %1177 = vmatpush1.msra.mxu0 0.0
        %1178 = vmatprep.subr.mxu0 0.0
        %1179 = vmatpush1.msra.mxu0 0.0
        %1180 = vmatprep.subr.mxu0 0.0
        %1181 = vmatpush1.msra.mxu0 0.0
        %1182 = vmatprep.subr.mxu0 0.0
        %1183 = vmatpush1.msra.mxu0 0.0
        %1184 = vmatprep.subr.mxu0 0.0
        %1185 = vmatpush1.msra.mxu0 0.0
        %1186 = vmatprep.subr.mxu0 0.0
        %1187 = vmatpush1.msra.mxu0 0.0
        %1188 = vmatprep.subr.mxu0 0.0
        %1189 = vmatpush1.msra.mxu0 0.0
        %1190 = vmatprep.subr.mxu0 0.0
        %1191 = vmatpush1.msra.mxu0 0.0
        %1192 = vmatprep.subr.mxu0 0.0
        %1193 = vmatpush1.msra.mxu0 0.0
        %1194 = vmatprep.subr.mxu0 0.0
        %1195 = vmatpush1.msra.mxu0 0.0
        %1196 = vmatprep.subr.mxu0 0.0
        %1197 = vmatpush1.msra.mxu0 0.0
        %1198 = vmatprep.subr.mxu0 0.0
        %1199 = vmatpush1.msra.mxu0 0.0
        %1200 = vmatprep.subr.mxu0 0.0
        %1201 = vmatpush1.msra.mxu0 0.0
        %1202 = vmatprep.subr.mxu0 0.0
        %1203 = vmatpush1.msra.mxu0 0.0
        %1204 = vmatprep.mubr.f32.mxu0 0.0
        %1205 = vmatmul.mubr.f32.gmra.mrb[0].mxu0 %v641
        %v1206 = vpop.f32.mrb[0].mxu0
        %v1207 = vadd.f32 %v378, %v1206
        %v1208 = vpop.f32.mrb[0].mxu0
        %v1209 = vadd.f32 %v382, %v1208
        %1210 = vdwg.mxu0
        %1211 = vmatprep.subr.mxu0 %v256
        %1212 = vmatpush1.msra.mxu0 %v255
        %1213 = vmatprep.subr.mxu0 0.0
        %1214 = vmatpush1.msra.mxu0 0.0
        %1215 = vmatprep.subr.mxu0 0.0
        %1216 = vmatpush1.msra.mxu0 0.0
        %1217 = vmatprep.subr.mxu0 0.0
        %1218 = vmatpush1.msra.mxu0 0.0
        %1219 = vmatprep.subr.mxu0 0.0
        %1220 = vmatpush1.msra.mxu0 0.0
        %1221 = vmatprep.subr.mxu0 0.0
        %1222 = vmatpush1.msra.mxu0 0.0
        %1223 = vmatprep.subr.mxu0 0.0
        %1224 = vmatpush1.msra.mxu0 0.0
        %1225 = vmatprep.subr.mxu0 0.0
        %1226 = vmatpush1.msra.mxu0 0.0
        %1227 = vmatprep.subr.mxu0 0.0
        %1228 = vmatpush1.msra.mxu0 0.0
        %1229 = vmatprep.subr.mxu0 0.0
        %1230 = vmatpush1.msra.mxu0 0.0
        %1231 = vmatprep.subr.mxu0 0.0
        %1232 = vmatpush1.msra.mxu0 0.0
        %1233 = vmatprep.subr.mxu0 0.0
        %1234 = vmatpush1.msra.mxu0 0.0
        %1235 = vmatprep.subr.mxu0 0.0
        %1236 = vmatpush1.msra.mxu0 0.0
        %1237 = vmatprep.subr.mxu0 0.0
        %1238 = vmatpush1.msra.mxu0 0.0
        %1239 = vmatprep.subr.mxu0 0.0
        %1240 = vmatpush1.msra.mxu0 0.0
        %1241 = vmatprep.subr.mxu0 0.0
        %1242 = vmatpush1.msra.mxu0 0.0
        %1243 = vmatprep.subr.mxu0 0.0
        %1244 = vmatpush1.msra.mxu0 0.0
        %1245 = vmatprep.subr.mxu0 0.0
        %1246 = vmatpush1.msra.mxu0 0.0
        %1247 = vmatprep.subr.mxu0 0.0
        %1248 = vmatpush1.msra.mxu0 0.0
        %1249 = vmatprep.subr.mxu0 0.0
        %1250 = vmatpush1.msra.mxu0 0.0
        %1251 = vmatprep.subr.mxu0 0.0
        %1252 = vmatpush1.msra.mxu0 0.0
        %1253 = vmatprep.subr.mxu0 0.0
        %1254 = vmatpush1.msra.mxu0 0.0
        %1255 = vmatprep.subr.mxu0 0.0
        %1256 = vmatpush1.msra.mxu0 0.0
        %1257 = vmatprep.subr.mxu0 0.0
        %1258 = vmatpush1.msra.mxu0 0.0
        %1259 = vmatprep.subr.mxu0 0.0
        %1260 = vmatpush1.msra.mxu0 0.0
        %1261 = vmatprep.subr.mxu0 0.0
        %1262 = vmatpush1.msra.mxu0 0.0
        %1263 = vmatprep.subr.mxu0 0.0
        %1264 = vmatpush1.msra.mxu0 0.0
        %1265 = vmatprep.subr.mxu0 0.0
        %1266 = vmatpush1.msra.mxu0 0.0
        %1267 = vmatprep.subr.mxu0 0.0
        %1268 = vmatpush1.msra.mxu0 0.0
        %1269 = vmatprep.subr.mxu0 0.0
        %1270 = vmatpush1.msra.mxu0 0.0
        %1271 = vmatprep.subr.mxu0 0.0
        %1272 = vmatpush1.msra.mxu0 0.0
        %1273 = vmatprep.subr.mxu0 0.0
        %1274 = vmatpush1.msra.mxu0 0.0
        %1275 = vmatprep.mubr.f32.mxu0 0.0
        %1276 = vmatmul.mubr.f32.gmra.mrb[0].mxu0 %v641
        %v1277 = vpop.f32.mrb[0].mxu0
        %v1278 = vadd.f32 %v386, %v1277
        %v1279 = vpop.f32.mrb[0].mxu0
        %v1280 = vadd.f32 %v390, %v1279
        %1281 = vdwg.mxu0
        %1282 = vmatprep.subr.mxu0 %v258
        %1283 = vmatpush1.msra.mxu0 %v257
        %1284 = vmatprep.subr.mxu0 0.0
        %1285 = vmatpush1.msra.mxu0 0.0
        %1286 = vmatprep.subr.mxu0 0.0
        %1287 = vmatpush1.msra.mxu0 0.0
        %1288 = vmatprep.subr.mxu0 0.0
        %1289 = vmatpush1.msra.mxu0 0.0
        %1290 = vmatprep.subr.mxu0 0.0
        %1291 = vmatpush1.msra.mxu0 0.0
        %1292 = vmatprep.subr.mxu0 0.0
        %1293 = vmatpush1.msra.mxu0 0.0
        %1294 = vmatprep.subr.mxu0 0.0
        %1295 = vmatpush1.msra.mxu0 0.0
        %1296 = vmatprep.subr.mxu0 0.0
        %1297 = vmatpush1.msra.mxu0 0.0
        %1298 = vmatprep.subr.mxu0 0.0
        %1299 = vmatpush1.msra.mxu0 0.0
        %1300 = vmatprep.subr.mxu0 0.0
        %1301 = vmatpush1.msra.mxu0 0.0
        %1302 = vmatprep.subr.mxu0 0.0
        %1303 = vmatpush1.msra.mxu0 0.0
        %1304 = vmatprep.subr.mxu0 0.0
        %1305 = vmatpush1.msra.mxu0 0.0
        %1306 = vmatprep.subr.mxu0 0.0
        %1307 = vmatpush1.msra.mxu0 0.0
        %1308 = vmatprep.subr.mxu0 0.0
        %1309 = vmatpush1.msra.mxu0 0.0
        %1310 = vmatprep.subr.mxu0 0.0
        %1311 = vmatpush1.msra.mxu0 0.0
        %1312 = vmatprep.subr.mxu0 0.0
        %1313 = vmatpush1.msra.mxu0 0.0
        %1314 = vmatprep.subr.mxu0 0.0
        %1315 = vmatpush1.msra.mxu0 0.0
        %1316 = vmatprep.subr.mxu0 0.0
        %1317 = vmatpush1.msra.mxu0 0.0
        %1318 = vmatprep.subr.mxu0 0.0
        %1319 = vmatpush1.msra.mxu0 0.0
        %1320 = vmatprep.subr.mxu0 0.0
        %1321 = vmatpush1.msra.mxu0 0.0
        %1322 = vmatprep.subr.mxu0 0.0
        %1323 = vmatpush1.msra.mxu0 0.0
        %1324 = vmatprep.subr.mxu0 0.0
        %1325 = vmatpush1.msra.mxu0 0.0
        %1326 = vmatprep.subr.mxu0 0.0
        %1327 = vmatpush1.msra.mxu0 0.0
        %1328 = vmatprep.subr.mxu0 0.0
        %1329 = vmatpush1.msra.mxu0 0.0
        %1330 = vmatprep.subr.mxu0 0.0
        %1331 = vmatpush1.msra.mxu0 0.0
        %1332 = vmatprep.subr.mxu0 0.0
        %1333 = vmatpush1.msra.mxu0 0.0
        %1334 = vmatprep.subr.mxu0 0.0
        %1335 = vmatpush1.msra.mxu0 0.0
        %1336 = vmatprep.subr.mxu0 0.0
        %1337 = vmatpush1.msra.mxu0 0.0
        %1338 = vmatprep.subr.mxu0 0.0
        %1339 = vmatpush1.msra.mxu0 0.0
        %1340 = vmatprep.subr.mxu0 0.0
        %1341 = vmatpush1.msra.mxu0 0.0
        %1342 = vmatprep.subr.mxu0 0.0
        %1343 = vmatpush1.msra.mxu0 0.0
        %1344 = vmatprep.subr.mxu0 0.0
        %1345 = vmatpush1.msra.mxu0 0.0
        %1346 = vmatprep.mubr.f32.mxu0 0.0
        %1347 = vmatmul.mubr.f32.gmra.mrb[0].mxu0 %v641
        %v1348 = vpop.f32.mrb[0].mxu0
        %v1349 = vadd.f32 %v394, %v1348
        %v1350 = vpop.f32.mrb[0].mxu0
        %v1351 = vadd.f32 %v398, %v1350
        %1352 = vdwg.mxu0
        %1353 = vmatprep.subr.mxu0 %v260
        %1354 = vmatpush1.msra.mxu0 %v259
        %1355 = vmatprep.subr.mxu0 0.0
        %1356 = vmatpush1.msra.mxu0 0.0
        %1357 = vmatprep.subr.mxu0 0.0
        %1358 = vmatpush1.msra.mxu0 0.0
        %1359 = vmatprep.subr.mxu0 0.0
        %1360 = vmatpush1.msra.mxu0 0.0
        %1361 = vmatprep.subr.mxu0 0.0
        %1362 = vmatpush1.msra.mxu0 0.0
        %1363 = vmatprep.subr.mxu0 0.0
        %1364 = vmatpush1.msra.mxu0 0.0
        %1365 = vmatprep.subr.mxu0 0.0
        %1366 = vmatpush1.msra.mxu0 0.0
        %1367 = vmatprep.subr.mxu0 0.0
        %1368 = vmatpush1.msra.mxu0 0.0
        %1369 = vmatprep.subr.mxu0 0.0
        %1370 = vmatpush1.msra.mxu0 0.0
        %1371 = vmatprep.subr.mxu0 0.0
        %1372 = vmatpush1.msra.mxu0 0.0
        %1373 = vmatprep.subr.mxu0 0.0
        %1374 = vmatpush1.msra.mxu0 0.0
        %1375 = vmatprep.subr.mxu0 0.0
        %1376 = vmatpush1.msra.mxu0 0.0
        %1377 = vmatprep.subr.mxu0 0.0
        %1378 = vmatpush1.msra.mxu0 0.0
        %1379 = vmatprep.subr.mxu0 0.0
        %1380 = vmatpush1.msra.mxu0 0.0
        %1381 = vmatprep.subr.mxu0 0.0
        %1382 = vmatpush1.msra.mxu0 0.0
        %1383 = vmatprep.subr.mxu0 0.0
        %1384 = vmatpush1.msra.mxu0 0.0
        %1385 = vmatprep.subr.mxu0 0.0
        %1386 = vmatpush1.msra.mxu0 0.0
        %1387 = vmatprep.subr.mxu0 0.0
        %1388 = vmatpush1.msra.mxu0 0.0
        %1389 = vmatprep.subr.mxu0 0.0
        %1390 = vmatpush1.msra.mxu0 0.0
        %1391 = vmatprep.subr.mxu0 0.0
        %1392 = vmatpush1.msra.mxu0 0.0
        %1393 = vmatprep.subr.mxu0 0.0
        %1394 = vmatpush1.msra.mxu0 0.0
        %1395 = vmatprep.subr.mxu0 0.0
        %1396 = vmatpush1.msra.mxu0 0.0
        %1397 = vmatprep.subr.mxu0 0.0
        %1398 = vmatpush1.msra.mxu0 0.0
        %1399 = vmatprep.subr.mxu0 0.0
        %1400 = vmatpush1.msra.mxu0 0.0
        %1401 = vmatprep.subr.mxu0 0.0
        %1402 = vmatpush1.msra.mxu0 0.0
        %1403 = vmatprep.subr.mxu0 0.0
        %1404 = vmatpush1.msra.mxu0 0.0
        %1405 = vmatprep.subr.mxu0 0.0
        %1406 = vmatpush1.msra.mxu0 0.0
        %1407 = vmatprep.subr.mxu0 0.0
        %1408 = vmatpush1.msra.mxu0 0.0
        %1409 = vmatprep.subr.mxu0 0.0
        %1410 = vmatpush1.msra.mxu0 0.0
        %1411 = vmatprep.subr.mxu0 0.0
        %1412 = vmatpush1.msra.mxu0 0.0
        %1413 = vmatprep.subr.mxu0 0.0
        %1414 = vmatpush1.msra.mxu0 0.0
        %1415 = vmatprep.subr.mxu0 0.0
        %1416 = vmatpush1.msra.mxu0 0.0
        %1417 = vmatprep.mubr.f32.mxu0 0.0
        %1418 = vmatmul.mubr.f32.gmra.mrb[0].mxu0 %v641
        %v1419 = vpop.f32.mrb[0].mxu0
        %v1420 = vadd.f32 %v402, %v1419
        %v1421 = vpop.f32.mrb[0].mxu0
        %v1422 = vadd.f32 %v406, %v1421
        %1423 = vdwg.mxu0
        %1424 = vmatprep.subr.mxu0 %v262
        %1425 = vmatpush1.msra.mxu0 %v261
        %1426 = vmatprep.subr.mxu0 0.0
        %1427 = vmatpush1.msra.mxu0 0.0
        %1428 = vmatprep.subr.mxu0 0.0
        %1429 = vmatpush1.msra.mxu0 0.0
        %1430 = vmatprep.subr.mxu0 0.0
        %1431 = vmatpush1.msra.mxu0 0.0
        %1432 = vmatprep.subr.mxu0 0.0
        %1433 = vmatpush1.msra.mxu0 0.0
        %1434 = vmatprep.subr.mxu0 0.0
        %1435 = vmatpush1.msra.mxu0 0.0
        %1436 = vmatprep.subr.mxu0 0.0
        %1437 = vmatpush1.msra.mxu0 0.0
        %1438 = vmatprep.subr.mxu0 0.0
        %1439 = vmatpush1.msra.mxu0 0.0
        %1440 = vmatprep.subr.mxu0 0.0
        %1441 = vmatpush1.msra.mxu0 0.0
        %1442 = vmatprep.subr.mxu0 0.0
        %1443 = vmatpush1.msra.mxu0 0.0
        %1444 = vmatprep.subr.mxu0 0.0
        %1445 = vmatpush1.msra.mxu0 0.0
        %1446 = vmatprep.subr.mxu0 0.0
        %1447 = vmatpush1.msra.mxu0 0.0
        %1448 = vmatprep.subr.mxu0 0.0
        %1449 = vmatpush1.msra.mxu0 0.0
        %1450 = vmatprep.subr.mxu0 0.0
        %1451 = vmatpush1.msra.mxu0 0.0
        %1452 = vmatprep.subr.mxu0 0.0
        %1453 = vmatpush1.msra.mxu0 0.0
        %1454 = vmatprep.subr.mxu0 0.0
        %1455 = vmatpush1.msra.mxu0 0.0
        %1456 = vmatprep.subr.mxu0 0.0
        %1457 = vmatpush1.msra.mxu0 0.0
        %1458 = vmatprep.subr.mxu0 0.0
        %1459 = vmatpush1.msra.mxu0 0.0
        %1460 = vmatprep.subr.mxu0 0.0
        %1461 = vmatpush1.msra.mxu0 0.0
        %1462 = vmatprep.subr.mxu0 0.0
        %1463 = vmatpush1.msra.mxu0 0.0
        %1464 = vmatprep.subr.mxu0 0.0
        %1465 = vmatpush1.msra.mxu0 0.0
        %1466 = vmatprep.subr.mxu0 0.0
        %1467 = vmatpush1.msra.mxu0 0.0
        %1468 = vmatprep.subr.mxu0 0.0
        %1469 = vmatpush1.msra.mxu0 0.0
        %1470 = vmatprep.subr.mxu0 0.0
        %1471 = vmatpush1.msra.mxu0 0.0
        %1472 = vmatprep.subr.mxu0 0.0
        %1473 = vmatpush1.msra.mxu0 0.0
        %1474 = vmatprep.subr.mxu0 0.0
        %1475 = vmatpush1.msra.mxu0 0.0
        %1476 = vmatprep.subr.mxu0 0.0
        %1477 = vmatpush1.msra.mxu0 0.0
        %1478 = vmatprep.subr.mxu0 0.0
        %1479 = vmatpush1.msra.mxu0 0.0
        %1480 = vmatprep.subr.mxu0 0.0
        %1481 = vmatpush1.msra.mxu0 0.0
        %1482 = vmatprep.subr.mxu0 0.0
        %1483 = vmatpush1.msra.mxu0 0.0
        %1484 = vmatprep.subr.mxu0 0.0
        %1485 = vmatpush1.msra.mxu0 0.0
        %1486 = vmatprep.subr.mxu0 0.0
        %1487 = vmatpush1.msra.mxu0 0.0
        %1488 = vmatprep.mubr.f32.mxu0 0.0
        %1489 = vmatmul.mubr.f32.gmra.mrb[0].mxu0 %v641
        %v1490 = vpop.f32.mrb[0].mxu0
        %v1491 = vadd.f32 %v410, %v1490
        %v1492 = vpop.f32.mrb[0].mxu0
        %v1493 = vadd.f32 %v414, %v1492
        %1494 = vdwg.mxu0
        %1495 = vmatprep.subr.mxu0 %v264
        %1496 = vmatpush1.msra.mxu0 %v263
        %1497 = vmatprep.subr.mxu0 0.0
        %1498 = vmatpush1.msra.mxu0 0.0
        %1499 = vmatprep.subr.mxu0 0.0
        %1500 = vmatpush1.msra.mxu0 0.0
        %1501 = vmatprep.subr.mxu0 0.0
        %1502 = vmatpush1.msra.mxu0 0.0
        %1503 = vmatprep.subr.mxu0 0.0
        %1504 = vmatpush1.msra.mxu0 0.0
        %1505 = vmatprep.subr.mxu0 0.0
        %1506 = vmatpush1.msra.mxu0 0.0
        %1507 = vmatprep.subr.mxu0 0.0
        %1508 = vmatpush1.msra.mxu0 0.0
        %1509 = vmatprep.subr.mxu0 0.0
        %1510 = vmatpush1.msra.mxu0 0.0
        %1511 = vmatprep.subr.mxu0 0.0
        %1512 = vmatpush1.msra.mxu0 0.0
        %1513 = vmatprep.subr.mxu0 0.0
        %1514 = vmatpush1.msra.mxu0 0.0
        %1515 = vmatprep.subr.mxu0 0.0
        %1516 = vmatpush1.msra.mxu0 0.0
        %1517 = vmatprep.subr.mxu0 0.0
        %1518 = vmatpush1.msra.mxu0 0.0
        %1519 = vmatprep.subr.mxu0 0.0
        %1520 = vmatpush1.msra.mxu0 0.0
        %1521 = vmatprep.subr.mxu0 0.0
        %1522 = vmatpush1.msra.mxu0 0.0
        %1523 = vmatprep.subr.mxu0 0.0
        %1524 = vmatpush1.msra.mxu0 0.0
        %1525 = vmatprep.subr.mxu0 0.0
        %1526 = vmatpush1.msra.mxu0 0.0
        %1527 = vmatprep.subr.mxu0 0.0
        %1528 = vmatpush1.msra.mxu0 0.0
        %1529 = vmatprep.subr.mxu0 0.0
        %1530 = vmatpush1.msra.mxu0 0.0
        %1531 = vmatprep.subr.mxu0 0.0
        %1532 = vmatpush1.msra.mxu0 0.0
        %1533 = vmatprep.subr.mxu0 0.0
        %1534 = vmatpush1.msra.mxu0 0.0
        %1535 = vmatprep.subr.mxu0 0.0
        %1536 = vmatpush1.msra.mxu0 0.0
        %1537 = vmatprep.subr.mxu0 0.0
        %1538 = vmatpush1.msra.mxu0 0.0
        %1539 = vmatprep.subr.mxu0 0.0
        %1540 = vmatpush1.msra.mxu0 0.0
        %1541 = vmatprep.subr.mxu0 0.0
        %1542 = vmatpush1.msra.mxu0 0.0
        %1543 = vmatprep.subr.mxu0 0.0
        %1544 = vmatpush1.msra.mxu0 0.0
        %1545 = vmatprep.subr.mxu0 0.0
        %1546 = vmatpush1.msra.mxu0 0.0
        %1547 = vmatprep.subr.mxu0 0.0
        %1548 = vmatpush1.msra.mxu0 0.0
        %1549 = vmatprep.subr.mxu0 0.0
        %1550 = vmatpush1.msra.mxu0 0.0
        %1551 = vmatprep.subr.mxu0 0.0
        %1552 = vmatpush1.msra.mxu0 0.0
        %1553 = vmatprep.subr.mxu0 0.0
        %1554 = vmatpush1.msra.mxu0 0.0
        %1555 = vmatprep.subr.mxu0 0.0
        %1556 = vmatpush1.msra.mxu0 0.0
        %1557 = vmatprep.subr.mxu0 0.0
        %1558 = vmatpush1.msra.mxu0 0.0
        %1559 = vmatprep.mubr.f32.mxu0 0.0
        %1560 = vmatmul.mubr.f32.gmra.mrb[0].mxu0 %v641
        %v1561 = vpop.f32.mrb[0].mxu0
        %v1562 = vadd.f32 %v418, %v1561
        %v1563 = vpop.f32.mrb[0].mxu0
        %v1564 = vadd.f32 %v422, %v1563
        %1565 = vdwg.mxu0
        %1566 = vmatprep.subr.mxu0 %v266
        %1567 = vmatpush1.msra.mxu0 %v265
        %1568 = vmatprep.subr.mxu0 0.0
        %1569 = vmatpush1.msra.mxu0 0.0
        %1570 = vmatprep.subr.mxu0 0.0
        %1571 = vmatpush1.msra.mxu0 0.0
        %1572 = vmatprep.subr.mxu0 0.0
        %1573 = vmatpush1.msra.mxu0 0.0
        %1574 = vmatprep.subr.mxu0 0.0
        %1575 = vmatpush1.msra.mxu0 0.0
        %1576 = vmatprep.subr.mxu0 0.0
        %1577 = vmatpush1.msra.mxu0 0.0
        %1578 = vmatprep.subr.mxu0 0.0
        %1579 = vmatpush1.msra.mxu0 0.0
        %1580 = vmatprep.subr.mxu0 0.0
        %1581 = vmatpush1.msra.mxu0 0.0
        %1582 = vmatprep.subr.mxu0 0.0
        %1583 = vmatpush1.msra.mxu0 0.0
        %1584 = vmatprep.subr.mxu0 0.0
        %1585 = vmatpush1.msra.mxu0 0.0
        %1586 = vmatprep.subr.mxu0 0.0
        %1587 = vmatpush1.msra.mxu0 0.0
        %1588 = vmatprep.subr.mxu0 0.0
        %1589 = vmatpush1.msra.mxu0 0.0
        %1590 = vmatprep.subr.mxu0 0.0
        %1591 = vmatpush1.msra.mxu0 0.0
        %1592 = vmatprep.subr.mxu0 0.0
        %1593 = vmatpush1.msra.mxu0 0.0
        %1594 = vmatprep.subr.mxu0 0.0
        %1595 = vmatpush1.msra.mxu0 0.0
        %1596 = vmatprep.subr.mxu0 0.0
        %1597 = vmatpush1.msra.mxu0 0.0
        %1598 = vmatprep.subr.mxu0 0.0
        %1599 = vmatpush1.msra.mxu0 0.0
        %1600 = vmatprep.subr.mxu0 0.0
        %1601 = vmatpush1.msra.mxu0 0.0
        %1602 = vmatprep.subr.mxu0 0.0
        %1603 = vmatpush1.msra.mxu0 0.0
        %1604 = vmatprep.subr.mxu0 0.0
        %1605 = vmatpush1.msra.mxu0 0.0
        %1606 = vmatprep.subr.mxu0 0.0
        %1607 = vmatpush1.msra.mxu0 0.0
        %1608 = vmatprep.subr.mxu0 0.0
        %1609 = vmatpush1.msra.mxu0 0.0
        %1610 = vmatprep.subr.mxu0 0.0
        %1611 = vmatpush1.msra.mxu0 0.0
        %1612 = vmatprep.subr.mxu0 0.0
        %1613 = vmatpush1.msra.mxu0 0.0
        %1614 = vmatprep.subr.mxu0 0.0
        %1615 = vmatpush1.msra.mxu0 0.0
        %1616 = vmatprep.subr.mxu0 0.0
        %1617 = vmatpush1.msra.mxu0 0.0
        %1618 = vmatprep.subr.mxu0 0.0
        %1619 = vmatpush1.msra.mxu0 0.0
        %1620 = vmatprep.subr.mxu0 0.0
        %1621 = vmatpush1.msra.mxu0 0.0
        %1622 = vmatprep.subr.mxu0 0.0
        %1623 = vmatpush1.msra.mxu0 0.0
        %1624 = vmatprep.subr.mxu0 0.0
        %1625 = vmatpush1.msra.mxu0 0.0
        %1626 = vmatprep.subr.mxu0 0.0
        %1627 = vmatpush1.msra.mxu0 0.0
        %1628 = vmatprep.subr.mxu0 0.0
        %1629 = vmatpush1.msra.mxu0 0.0
        %1630 = vmatprep.mubr.f32.mxu0 0.0
        %1631 = vmatmul.mubr.f32.gmra.mrb[0].mxu0 %v641
        %v1632 = vpop.f32.mrb[0].mxu0
        %v1633 = vadd.f32 %v426, %v1632
        %v1634 = vpop.f32.mrb[0].mxu0
        %v1635 = vadd.f32 %v430, %v1634
        %1636 = vdwg.mxu0
        %1637 = vmatprep.subr.mxu0 %v268
        %1638 = vmatpush1.msra.mxu0 %v267
        %1639 = vmatprep.subr.mxu0 0.0
        %1640 = vmatpush1.msra.mxu0 0.0
        %1641 = vmatprep.subr.mxu0 0.0
        %1642 = vmatpush1.msra.mxu0 0.0
        %1643 = vmatprep.subr.mxu0 0.0
        %1644 = vmatpush1.msra.mxu0 0.0
        %1645 = vmatprep.subr.mxu0 0.0
        %1646 = vmatpush1.msra.mxu0 0.0
        %1647 = vmatprep.subr.mxu0 0.0
        %1648 = vmatpush1.msra.mxu0 0.0
        %1649 = vmatprep.subr.mxu0 0.0
        %1650 = vmatpush1.msra.mxu0 0.0
        %1651 = vmatprep.subr.mxu0 0.0
        %1652 = vmatpush1.msra.mxu0 0.0
        %1653 = vmatprep.subr.mxu0 0.0
        %1654 = vmatpush1.msra.mxu0 0.0
        %1655 = vmatprep.subr.mxu0 0.0
        %1656 = vmatpush1.msra.mxu0 0.0
        %1657 = vmatprep.subr.mxu0 0.0
        %1658 = vmatpush1.msra.mxu0 0.0
        %1659 = vmatprep.subr.mxu0 0.0
        %1660 = vmatpush1.msra.mxu0 0.0
        %1661 = vmatprep.subr.mxu0 0.0
        %1662 = vmatpush1.msra.mxu0 0.0
        %1663 = vmatprep.subr.mxu0 0.0
        %1664 = vmatpush1.msra.mxu0 0.0
        %1665 = vmatprep.subr.mxu0 0.0
        %1666 = vmatpush1.msra.mxu0 0.0
        %1667 = vmatprep.subr.mxu0 0.0
        %1668 = vmatpush1.msra.mxu0 0.0
        %1669 = vmatprep.subr.mxu0 0.0
        %1670 = vmatpush1.msra.mxu0 0.0
        %1671 = vmatprep.subr.mxu0 0.0
        %1672 = vmatpush1.msra.mxu0 0.0
        %1673 = vmatprep.subr.mxu0 0.0
        %1674 = vmatpush1.msra.mxu0 0.0
        %1675 = vmatprep.subr.mxu0 0.0
        %1676 = vmatpush1.msra.mxu0 0.0
        %1677 = vmatprep.subr.mxu0 0.0
        %1678 = vmatpush1.msra.mxu0 0.0
        %1679 = vmatprep.subr.mxu0 0.0
        %1680 = vmatpush1.msra.mxu0 0.0
        %1681 = vmatprep.subr.mxu0 0.0
        %1682 = vmatpush1.msra.mxu0 0.0
        %1683 = vmatprep.subr.mxu0 0.0
        %1684 = vmatpush1.msra.mxu0 0.0
        %1685 = vmatprep.subr.mxu0 0.0
        %1686 = vmatpush1.msra.mxu0 0.0
        %1687 = vmatprep.subr.mxu0 0.0
        %1688 = vmatpush1.msra.mxu0 0.0
        %1689 = vmatprep.subr.mxu0 0.0
        %1690 = vmatpush1.msra.mxu0 0.0
        %1691 = vmatprep.subr.mxu0 0.0
        %1692 = vmatpush1.msra.mxu0 0.0
        %1693 = vmatprep.subr.mxu0 0.0
        %1694 = vmatpush1.msra.mxu0 0.0
        %1695 = vmatprep.subr.mxu0 0.0
        %1696 = vmatpush1.msra.mxu0 0.0
        %1697 = vmatprep.subr.mxu0 0.0
        %1698 = vmatpush1.msra.mxu0 0.0
        %1699 = vmatprep.subr.mxu0 0.0
        %1700 = vmatpush1.msra.mxu0 0.0
        %1701 = vmatprep.mubr.f32.mxu0 0.0
        %1702 = vmatmul.mubr.f32.gmra.mrb[0].mxu0 %v641
        %v1703 = vpop.f32.mrb[0].mxu0
        %v1704 = vadd.f32 %v434, %v1703
        %v1705 = vpop.f32.mrb[0].mxu0
        %v1706 = vadd.f32 %v438, %v1705
        %1707 = vdwg.mxu0
        %1708 = vmatprep.subr.mxu0 %v270
        %1709 = vmatpush1.msra.mxu0 %v269
        %1710 = vmatprep.subr.mxu0 0.0
        %1711 = vmatpush1.msra.mxu0 0.0
        %1712 = vmatprep.subr.mxu0 0.0
        %1713 = vmatpush1.msra.mxu0 0.0
        %1714 = vmatprep.subr.mxu0 0.0
        %1715 = vmatpush1.msra.mxu0 0.0
        %1716 = vmatprep.subr.mxu0 0.0
        %1717 = vmatpush1.msra.mxu0 0.0
        %1718 = vmatprep.subr.mxu0 0.0
        %1719 = vmatpush1.msra.mxu0 0.0
        %1720 = vmatprep.subr.mxu0 0.0
        %1721 = vmatpush1.msra.mxu0 0.0
        %1722 = vmatprep.subr.mxu0 0.0
        %1723 = vmatpush1.msra.mxu0 0.0
        %1724 = vmatprep.subr.mxu0 0.0
        %1725 = vmatpush1.msra.mxu0 0.0
        %1726 = vmatprep.subr.mxu0 0.0
        %1727 = vmatpush1.msra.mxu0 0.0
        %1728 = vmatprep.subr.mxu0 0.0
        %1729 = vmatpush1.msra.mxu0 0.0
        %1730 = vmatprep.subr.mxu0 0.0
        %1731 = vmatpush1.msra.mxu0 0.0
        %1732 = vmatprep.subr.mxu0 0.0
        %1733 = vmatpush1.msra.mxu0 0.0
        %1734 = vmatprep.subr.mxu0 0.0
        %1735 = vmatpush1.msra.mxu0 0.0
        %1736 = vmatprep.subr.mxu0 0.0
        %1737 = vmatpush1.msra.mxu0 0.0
        %1738 = vmatprep.subr.mxu0 0.0
        %1739 = vmatpush1.msra.mxu0 0.0
        %1740 = vmatprep.subr.mxu0 0.0
        %1741 = vmatpush1.msra.mxu0 0.0
        %1742 = vmatprep.subr.mxu0 0.0
        %1743 = vmatpush1.msra.mxu0 0.0
        %1744 = vmatprep.subr.mxu0 0.0
        %1745 = vmatpush1.msra.mxu0 0.0
        %1746 = vmatprep.subr.mxu0 0.0
        %1747 = vmatpush1.msra.mxu0 0.0
        %1748 = vmatprep.subr.mxu0 0.0
        %1749 = vmatpush1.msra.mxu0 0.0
        %1750 = vmatprep.subr.mxu0 0.0
        %1751 = vmatpush1.msra.mxu0 0.0
        %1752 = vmatprep.subr.mxu0 0.0
        %1753 = vmatpush1.msra.mxu0 0.0
        %1754 = vmatprep.subr.mxu0 0.0
        %1755 = vmatpush1.msra.mxu0 0.0
        %1756 = vmatprep.subr.mxu0 0.0
        %1757 = vmatpush1.msra.mxu0 0.0
        %1758 = vmatprep.subr.mxu0 0.0
        %1759 = vmatpush1.msra.mxu0 0.0
        %1760 = vmatprep.subr.mxu0 0.0
        %1761 = vmatpush1.msra.mxu0 0.0
        %1762 = vmatprep.subr.mxu0 0.0
        %1763 = vmatpush1.msra.mxu0 0.0
        %1764 = vmatprep.subr.mxu0 0.0
        %1765 = vmatpush1.msra.mxu0 0.0
        %1766 = vmatprep.subr.mxu0 0.0
        %1767 = vmatpush1.msra.mxu0 0.0
        %1768 = vmatprep.subr.mxu0 0.0
        %1769 = vmatpush1.msra.mxu0 0.0
        %1770 = vmatprep.subr.mxu0 0.0
        %1771 = vmatpush1.msra.mxu0 0.0
        %1772 = vmatprep.mubr.f32.mxu0 0.0
        %1773 = vmatmul.mubr.f32.gmra.mrb[0].mxu0 %v641
        %v1774 = vpop.f32.mrb[0].mxu0
        %v1775 = vadd.f32 %v442, %v1774
        %v1776 = vpop.f32.mrb[0].mxu0
        %v1777 = vadd.f32 %v446, %v1776
        %1778 = vdwg.mxu0
        %1779 = vmatprep.subr.mxu0 %v272
        %1780 = vmatpush1.msra.mxu0 %v271
        %1781 = vmatprep.subr.mxu0 0.0
        %1782 = vmatpush1.msra.mxu0 0.0
        %1783 = vmatprep.subr.mxu0 0.0
        %1784 = vmatpush1.msra.mxu0 0.0
        %1785 = vmatprep.subr.mxu0 0.0
        %1786 = vmatpush1.msra.mxu0 0.0
        %1787 = vmatprep.subr.mxu0 0.0
        %1788 = vmatpush1.msra.mxu0 0.0
        %1789 = vmatprep.subr.mxu0 0.0
        %1790 = vmatpush1.msra.mxu0 0.0
        %1791 = vmatprep.subr.mxu0 0.0
        %1792 = vmatpush1.msra.mxu0 0.0
        %1793 = vmatprep.subr.mxu0 0.0
        %1794 = vmatpush1.msra.mxu0 0.0
        %1795 = vmatprep.subr.mxu0 0.0
        %1796 = vmatpush1.msra.mxu0 0.0
        %1797 = vmatprep.subr.mxu0 0.0
        %1798 = vmatpush1.msra.mxu0 0.0
        %1799 = vmatprep.subr.mxu0 0.0
        %1800 = vmatpush1.msra.mxu0 0.0
        %1801 = vmatprep.subr.mxu0 0.0
        %1802 = vmatpush1.msra.mxu0 0.0
        %1803 = vmatprep.subr.mxu0 0.0
        %1804 = vmatpush1.msra.mxu0 0.0
        %1805 = vmatprep.subr.mxu0 0.0
        %1806 = vmatpush1.msra.mxu0 0.0
        %1807 = vmatprep.subr.mxu0 0.0
        %1808 = vmatpush1.msra.mxu0 0.0
        %1809 = vmatprep.subr.mxu0 0.0
        %1810 = vmatpush1.msra.mxu0 0.0
        %1811 = vmatprep.subr.mxu0 0.0
        %1812 = vmatpush1.msra.mxu0 0.0
        %1813 = vmatprep.subr.mxu0 0.0
        %1814 = vmatpush1.msra.mxu0 0.0
        %1815 = vmatprep.subr.mxu0 0.0
        %1816 = vmatpush1.msra.mxu0 0.0
        %1817 = vmatprep.subr.mxu0 0.0
        %1818 = vmatpush1.msra.mxu0 0.0
        %1819 = vmatprep.subr.mxu0 0.0
        %1820 = vmatpush1.msra.mxu0 0.0
        %1821 = vmatprep.subr.mxu0 0.0
        %1822 = vmatpush1.msra.mxu0 0.0
        %1823 = vmatprep.subr.mxu0 0.0
        %1824 = vmatpush1.msra.mxu0 0.0
        %1825 = vmatprep.subr.mxu0 0.0
        %1826 = vmatpush1.msra.mxu0 0.0
        %1827 = vmatprep.subr.mxu0 0.0
        %1828 = vmatpush1.msra.mxu0 0.0
        %1829 = vmatprep.subr.mxu0 0.0
        %1830 = vmatpush1.msra.mxu0 0.0
        %1831 = vmatprep.subr.mxu0 0.0
        %1832 = vmatpush1.msra.mxu0 0.0
        %1833 = vmatprep.subr.mxu0 0.0
        %1834 = vmatpush1.msra.mxu0 0.0
        %1835 = vmatprep.subr.mxu0 0.0
        %1836 = vmatpush1.msra.mxu0 0.0
        %1837 = vmatprep.subr.mxu0 0.0
        %1838 = vmatpush1.msra.mxu0 0.0
        %1839 = vmatprep.subr.mxu0 0.0
        %1840 = vmatpush1.msra.mxu0 0.0
        %1841 = vmatprep.subr.mxu0 0.0
        %1842 = vmatpush1.msra.mxu0 0.0
        %1843 = vmatprep.mubr.f32.mxu0 0.0
        %1844 = vmatmul.mubr.f32.gmra.mrb[0].mxu0 %v641
        %v1845 = vpop.f32.mrb[0].mxu0
        %v1846 = vadd.f32 %v450, %v1845
        %v1847 = vpop.f32.mrb[0].mxu0
        %v1848 = vadd.f32 %v454, %v1847
        %1849 = vdwg.mxu0
        %1850 = vmatprep.subr.mxu0 %v274
        %1851 = vmatpush1.msra.mxu0 %v273
        %1852 = vmatprep.subr.mxu0 0.0
        %1853 = vmatpush1.msra.mxu0 0.0
        %1854 = vmatprep.subr.mxu0 0.0
        %1855 = vmatpush1.msra.mxu0 0.0
        %1856 = vmatprep.subr.mxu0 0.0
        %1857 = vmatpush1.msra.mxu0 0.0
        %1858 = vmatprep.subr.mxu0 0.0
        %1859 = vmatpush1.msra.mxu0 0.0
        %1860 = vmatprep.subr.mxu0 0.0
        %1861 = vmatpush1.msra.mxu0 0.0
        %1862 = vmatprep.subr.mxu0 0.0
        %1863 = vmatpush1.msra.mxu0 0.0
        %1864 = vmatprep.subr.mxu0 0.0
        %1865 = vmatpush1.msra.mxu0 0.0
        %1866 = vmatprep.subr.mxu0 0.0
        %1867 = vmatpush1.msra.mxu0 0.0
        %1868 = vmatprep.subr.mxu0 0.0
        %1869 = vmatpush1.msra.mxu0 0.0
        %1870 = vmatprep.subr.mxu0 0.0
        %1871 = vmatpush1.msra.mxu0 0.0
        %1872 = vmatprep.subr.mxu0 0.0
        %1873 = vmatpush1.msra.mxu0 0.0
        %1874 = vmatprep.subr.mxu0 0.0
        %1875 = vmatpush1.msra.mxu0 0.0
        %1876 = vmatprep.subr.mxu0 0.0
        %1877 = vmatpush1.msra.mxu0 0.0
        %1878 = vmatprep.subr.mxu0 0.0
        %1879 = vmatpush1.msra.mxu0 0.0
        %1880 = vmatprep.subr.mxu0 0.0
        %1881 = vmatpush1.msra.mxu0 0.0
        %1882 = vmatprep.subr.mxu0 0.0
        %1883 = vmatpush1.msra.mxu0 0.0
        %1884 = vmatprep.subr.mxu0 0.0
        %1885 = vmatpush1.msra.mxu0 0.0
        %1886 = vmatprep.subr.mxu0 0.0
        %1887 = vmatpush1.msra.mxu0 0.0
        %1888 = vmatprep.subr.mxu0 0.0
        %1889 = vmatpush1.msra.mxu0 0.0
        %1890 = vmatprep.subr.mxu0 0.0
        %1891 = vmatpush1.msra.mxu0 0.0
        %1892 = vmatprep.subr.mxu0 0.0
        %1893 = vmatpush1.msra.mxu0 0.0
        %1894 = vmatprep.subr.mxu0 0.0
        %1895 = vmatpush1.msra.mxu0 0.0
        %1896 = vmatprep.subr.mxu0 0.0
        %1897 = vmatpush1.msra.mxu0 0.0
        %1898 = vmatprep.subr.mxu0 0.0
        %1899 = vmatpush1.msra.mxu0 0.0
        %1900 = vmatprep.subr.mxu0 0.0
        %1901 = vmatpush1.msra.mxu0 0.0
        %1902 = vmatprep.subr.mxu0 0.0
        %1903 = vmatpush1.msra.mxu0 0.0
        %1904 = vmatprep.subr.mxu0 0.0
        %1905 = vmatpush1.msra.mxu0 0.0
        %1906 = vmatprep.subr.mxu0 0.0
        %1907 = vmatpush1.msra.mxu0 0.0
        %1908 = vmatprep.subr.mxu0 0.0
        %1909 = vmatpush1.msra.mxu0 0.0
        %1910 = vmatprep.subr.mxu0 0.0
        %1911 = vmatpush1.msra.mxu0 0.0
        %1912 = vmatprep.subr.mxu0 0.0
        %1913 = vmatpush1.msra.mxu0 0.0
        %1914 = vmatprep.mubr.f32.mxu0 0.0
        %1915 = vmatmul.mubr.f32.gmra.mrb[0].mxu0 %v641
        %v1916 = vpop.f32.mrb[0].mxu0
        %v1917 = vadd.f32 %v458, %v1916
        %v1918 = vpop.f32.mrb[0].mxu0
        %v1919 = vadd.f32 %v462, %v1918
        %1920 = vdwg.mxu0
        %1921 = vmatprep.subr.mxu0 %v276
        %1922 = vmatpush1.msra.mxu0 %v275
        %1923 = vmatprep.subr.mxu0 0.0
        %1924 = vmatpush1.msra.mxu0 0.0
        %1925 = vmatprep.subr.mxu0 0.0
        %1926 = vmatpush1.msra.mxu0 0.0
        %1927 = vmatprep.subr.mxu0 0.0
        %1928 = vmatpush1.msra.mxu0 0.0
        %1929 = vmatprep.subr.mxu0 0.0
        %1930 = vmatpush1.msra.mxu0 0.0
        %1931 = vmatprep.subr.mxu0 0.0
        %1932 = vmatpush1.msra.mxu0 0.0
        %1933 = vmatprep.subr.mxu0 0.0
        %1934 = vmatpush1.msra.mxu0 0.0
        %1935 = vmatprep.subr.mxu0 0.0
        %1936 = vmatpush1.msra.mxu0 0.0
        %1937 = vmatprep.subr.mxu0 0.0
        %1938 = vmatpush1.msra.mxu0 0.0
        %1939 = vmatprep.subr.mxu0 0.0
        %1940 = vmatpush1.msra.mxu0 0.0
        %1941 = vmatprep.subr.mxu0 0.0
        %1942 = vmatpush1.msra.mxu0 0.0
        %1943 = vmatprep.subr.mxu0 0.0
        %1944 = vmatpush1.msra.mxu0 0.0
        %1945 = vmatprep.subr.mxu0 0.0
        %1946 = vmatpush1.msra.mxu0 0.0
        %1947 = vmatprep.subr.mxu0 0.0
        %1948 = vmatpush1.msra.mxu0 0.0
        %1949 = vmatprep.subr.mxu0 0.0
        %1950 = vmatpush1.msra.mxu0 0.0
        %1951 = vmatprep.subr.mxu0 0.0
        %1952 = vmatpush1.msra.mxu0 0.0
        %1953 = vmatprep.subr.mxu0 0.0
        %1954 = vmatpush1.msra.mxu0 0.0
        %1955 = vmatprep.subr.mxu0 0.0
        %1956 = vmatpush1.msra.mxu0 0.0
        %1957 = vmatprep.subr.mxu0 0.0
        %1958 = vmatpush1.msra.mxu0 0.0
        %1959 = vmatprep.subr.mxu0 0.0
        %1960 = vmatpush1.msra.mxu0 0.0
        %1961 = vmatprep.subr.mxu0 0.0
        %1962 = vmatpush1.msra.mxu0 0.0
        %1963 = vmatprep.subr.mxu0 0.0
        %1964 = vmatpush1.msra.mxu0 0.0
        %1965 = vmatprep.subr.mxu0 0.0
        %1966 = vmatpush1.msra.mxu0 0.0
        %1967 = vmatprep.subr.mxu0 0.0
        %1968 = vmatpush1.msra.mxu0 0.0
        %1969 = vmatprep.subr.mxu0 0.0
        %1970 = vmatpush1.msra.mxu0 0.0
        %1971 = vmatprep.subr.mxu0 0.0
        %1972 = vmatpush1.msra.mxu0 0.0
        %1973 = vmatprep.subr.mxu0 0.0
        %1974 = vmatpush1.msra.mxu0 0.0
        %1975 = vmatprep.subr.mxu0 0.0
        %1976 = vmatpush1.msra.mxu0 0.0
        %1977 = vmatprep.subr.mxu0 0.0
        %1978 = vmatpush1.msra.mxu0 0.0
        %1979 = vmatprep.subr.mxu0 0.0
        %1980 = vmatpush1.msra.mxu0 0.0
        %1981 = vmatprep.subr.mxu0 0.0
        %1982 = vmatpush1.msra.mxu0 0.0
        %1983 = vmatprep.subr.mxu0 0.0
        %1984 = vmatpush1.msra.mxu0 0.0
        %1985 = vmatprep.mubr.f32.mxu0 0.0
        %1986 = vmatmul.mubr.f32.gmra.mrb[0].mxu0 %v641
        %v1987 = vpop.f32.mrb[0].mxu0
        %v1988 = vadd.f32 %v466, %v1987
        %v1989 = vpop.f32.mrb[0].mxu0
        %v1990 = vadd.f32 %v470, %v1989
        %1991 = vdwg.mxu0
        %1992 = vmatprep.subr.mxu0 %v278
        %1993 = vmatpush1.msra.mxu0 %v277
        %1994 = vmatprep.subr.mxu0 0.0
        %1995 = vmatpush1.msra.mxu0 0.0
        %1996 = vmatprep.subr.mxu0 0.0
        %1997 = vmatpush1.msra.mxu0 0.0
        %1998 = vmatprep.subr.mxu0 0.0
        %1999 = vmatpush1.msra.mxu0 0.0
        %2000 = vmatprep.subr.mxu0 0.0
        %2001 = vmatpush1.msra.mxu0 0.0
        %2002 = vmatprep.subr.mxu0 0.0
        %2003 = vmatpush1.msra.mxu0 0.0
        %2004 = vmatprep.subr.mxu0 0.0
        %2005 = vmatpush1.msra.mxu0 0.0
        %2006 = vmatprep.subr.mxu0 0.0
        %2007 = vmatpush1.msra.mxu0 0.0
        %2008 = vmatprep.subr.mxu0 0.0
        %2009 = vmatpush1.msra.mxu0 0.0
        %2010 = vmatprep.subr.mxu0 0.0
        %2011 = vmatpush1.msra.mxu0 0.0
        %2012 = vmatprep.subr.mxu0 0.0
        %2013 = vmatpush1.msra.mxu0 0.0
        %2014 = vmatprep.subr.mxu0 0.0
        %2015 = vmatpush1.msra.mxu0 0.0
        %2016 = vmatprep.subr.mxu0 0.0
        %2017 = vmatpush1.msra.mxu0 0.0
        %2018 = vmatprep.subr.mxu0 0.0
        %2019 = vmatpush1.msra.mxu0 0.0
        %2020 = vmatprep.subr.mxu0 0.0
        %2021 = vmatpush1.msra.mxu0 0.0
        %2022 = vmatprep.subr.mxu0 0.0
        %2023 = vmatpush1.msra.mxu0 0.0
        %2024 = vmatprep.subr.mxu0 0.0
        %2025 = vmatpush1.msra.mxu0 0.0
        %2026 = vmatprep.subr.mxu0 0.0
        %2027 = vmatpush1.msra.mxu0 0.0
        %2028 = vmatprep.subr.mxu0 0.0
        %2029 = vmatpush1.msra.mxu0 0.0
        %2030 = vmatprep.subr.mxu0 0.0
        %2031 = vmatpush1.msra.mxu0 0.0
        %2032 = vmatprep.subr.mxu0 0.0
        %2033 = vmatpush1.msra.mxu0 0.0
        %2034 = vmatprep.subr.mxu0 0.0
        %2035 = vmatpush1.msra.mxu0 0.0
        %2036 = vmatprep.subr.mxu0 0.0
        %2037 = vmatpush1.msra.mxu0 0.0
        %2038 = vmatprep.subr.mxu0 0.0
        %2039 = vmatpush1.msra.mxu0 0.0
        %2040 = vmatprep.subr.mxu0 0.0
        %2041 = vmatpush1.msra.mxu0 0.0
        %2042 = vmatprep.subr.mxu0 0.0
        %2043 = vmatpush1.msra.mxu0 0.0
        %2044 = vmatprep.subr.mxu0 0.0
        %2045 = vmatpush1.msra.mxu0 0.0
        %2046 = vmatprep.subr.mxu0 0.0
        %2047 = vmatpush1.msra.mxu0 0.0
        %2048 = vmatprep.subr.mxu0 0.0
        %2049 = vmatpush1.msra.mxu0 0.0
        %2050 = vmatprep.subr.mxu0 0.0
        %2051 = vmatpush1.msra.mxu0 0.0
        %2052 = vmatprep.subr.mxu0 0.0
        %2053 = vmatpush1.msra.mxu0 0.0
        %2054 = vmatprep.subr.mxu0 0.0
        %2055 = vmatpush1.msra.mxu0 0.0
        %2056 = vmatprep.mubr.f32.mxu0 0.0
        %2057 = vmatmul.mubr.f32.gmra.mrb[0].mxu0 %v641
        %v2058 = vpop.f32.mrb[0].mxu0
        %v2059 = vadd.f32 %v474, %v2058
        %v2060 = vpop.f32.mrb[0].mxu0
        %v2061 = vadd.f32 %v478, %v2060
        %2062 = vdwg.mxu0
        %2063 = vmatprep.subr.mxu0 %v280
        %2064 = vmatpush1.msra.mxu0 %v279
        %2065 = vmatprep.subr.mxu0 0.0
        %2066 = vmatpush1.msra.mxu0 0.0
        %2067 = vmatprep.subr.mxu0 0.0
        %2068 = vmatpush1.msra.mxu0 0.0
        %2069 = vmatprep.subr.mxu0 0.0
        %2070 = vmatpush1.msra.mxu0 0.0
        %2071 = vmatprep.subr.mxu0 0.0
        %2072 = vmatpush1.msra.mxu0 0.0
        %2073 = vmatprep.subr.mxu0 0.0
        %2074 = vmatpush1.msra.mxu0 0.0
        %2075 = vmatprep.subr.mxu0 0.0
        %2076 = vmatpush1.msra.mxu0 0.0
        %2077 = vmatprep.subr.mxu0 0.0
        %2078 = vmatpush1.msra.mxu0 0.0
        %2079 = vmatprep.subr.mxu0 0.0
        %2080 = vmatpush1.msra.mxu0 0.0
        %2081 = vmatprep.subr.mxu0 0.0
        %2082 = vmatpush1.msra.mxu0 0.0
        %2083 = vmatprep.subr.mxu0 0.0
        %2084 = vmatpush1.msra.mxu0 0.0
        %2085 = vmatprep.subr.mxu0 0.0
        %2086 = vmatpush1.msra.mxu0 0.0
        %2087 = vmatprep.subr.mxu0 0.0
        %2088 = vmatpush1.msra.mxu0 0.0
        %2089 = vmatprep.subr.mxu0 0.0
        %2090 = vmatpush1.msra.mxu0 0.0
        %2091 = vmatprep.subr.mxu0 0.0
        %2092 = vmatpush1.msra.mxu0 0.0
        %2093 = vmatprep.subr.mxu0 0.0
        %2094 = vmatpush1.msra.mxu0 0.0
        %2095 = vmatprep.subr.mxu0 0.0
        %2096 = vmatpush1.msra.mxu0 0.0
        %2097 = vmatprep.subr.mxu0 0.0
        %2098 = vmatpush1.msra.mxu0 0.0
        %2099 = vmatprep.subr.mxu0 0.0
        %2100 = vmatpush1.msra.mxu0 0.0
        %2101 = vmatprep.subr.mxu0 0.0
        %2102 = vmatpush1.msra.mxu0 0.0
        %2103 = vmatprep.subr.mxu0 0.0
        %2104 = vmatpush1.msra.mxu0 0.0
        %2105 = vmatprep.subr.mxu0 0.0
        %2106 = vmatpush1.msra.mxu0 0.0
        %2107 = vmatprep.subr.mxu0 0.0
        %2108 = vmatpush1.msra.mxu0 0.0
        %2109 = vmatprep.subr.mxu0 0.0
        %2110 = vmatpush1.msra.mxu0 0.0
        %2111 = vmatprep.subr.mxu0 0.0
        %2112 = vmatpush1.msra.mxu0 0.0
        %2113 = vmatprep.subr.mxu0 0.0
        %2114 = vmatpush1.msra.mxu0 0.0
        %2115 = vmatprep.subr.mxu0 0.0
        %2116 = vmatpush1.msra.mxu0 0.0
        %2117 = vmatprep.subr.mxu0 0.0
        %2118 = vmatpush1.msra.mxu0 0.0
        %2119 = vmatprep.subr.mxu0 0.0
        %2120 = vmatpush1.msra.mxu0 0.0
        %2121 = vmatprep.subr.mxu0 0.0
        %2122 = vmatpush1.msra.mxu0 0.0
        %2123 = vmatprep.subr.mxu0 0.0
        %2124 = vmatpush1.msra.mxu0 0.0
        %2125 = vmatprep.subr.mxu0 0.0
        %2126 = vmatpush1.msra.mxu0 0.0
        %2127 = vmatprep.mubr.f32.mxu0 0.0
        %2128 = vmatmul.mubr.f32.gmra.mrb[0].mxu0 %v641
        %v2129 = vpop.f32.mrb[0].mxu0
        %v2130 = vadd.f32 %v482, %v2129
        %v2131 = vpop.f32.mrb[0].mxu0
        %v2132 = vadd.f32 %v486, %v2131
        %2133 = vdwg.mxu0
        %2134 = vmatprep.subr.mxu0 %v282
        %2135 = vmatpush1.msra.mxu0 %v281
        %2136 = vmatprep.subr.mxu0 0.0
        %2137 = vmatpush1.msra.mxu0 0.0
        %2138 = vmatprep.subr.mxu0 0.0
        %2139 = vmatpush1.msra.mxu0 0.0
        %2140 = vmatprep.subr.mxu0 0.0
        %2141 = vmatpush1.msra.mxu0 0.0
        %2142 = vmatprep.subr.mxu0 0.0
        %2143 = vmatpush1.msra.mxu0 0.0
        %2144 = vmatprep.subr.mxu0 0.0
        %2145 = vmatpush1.msra.mxu0 0.0
        %2146 = vmatprep.subr.mxu0 0.0
        %2147 = vmatpush1.msra.mxu0 0.0
        %2148 = vmatprep.subr.mxu0 0.0
        %2149 = vmatpush1.msra.mxu0 0.0
        %2150 = vmatprep.subr.mxu0 0.0
        %2151 = vmatpush1.msra.mxu0 0.0
        %2152 = vmatprep.subr.mxu0 0.0
        %2153 = vmatpush1.msra.mxu0 0.0
        %2154 = vmatprep.subr.mxu0 0.0
        %2155 = vmatpush1.msra.mxu0 0.0
        %2156 = vmatprep.subr.mxu0 0.0
        %2157 = vmatpush1.msra.mxu0 0.0
        %2158 = vmatprep.subr.mxu0 0.0
        %2159 = vmatpush1.msra.mxu0 0.0
        %2160 = vmatprep.subr.mxu0 0.0
        %2161 = vmatpush1.msra.mxu0 0.0
        %2162 = vmatprep.subr.mxu0 0.0
        %2163 = vmatpush1.msra.mxu0 0.0
        %2164 = vmatprep.subr.mxu0 0.0
        %2165 = vmatpush1.msra.mxu0 0.0
        %2166 = vmatprep.subr.mxu0 0.0
        %2167 = vmatpush1.msra.mxu0 0.0
        %2168 = vmatprep.subr.mxu0 0.0
        %2169 = vmatpush1.msra.mxu0 0.0
        %2170 = vmatprep.subr.mxu0 0.0
        %2171 = vmatpush1.msra.mxu0 0.0
        %2172 = vmatprep.subr.mxu0 0.0
        %2173 = vmatpush1.msra.mxu0 0.0
        %2174 = vmatprep.subr.mxu0 0.0
        %2175 = vmatpush1.msra.mxu0 0.0
        %2176 = vmatprep.subr.mxu0 0.0
        %2177 = vmatpush1.msra.mxu0 0.0
        %2178 = vmatprep.subr.mxu0 0.0
        %2179 = vmatpush1.msra.mxu0 0.0
        %2180 = vmatprep.subr.mxu0 0.0
        %2181 = vmatpush1.msra.mxu0 0.0
        %2182 = vmatprep.subr.mxu0 0.0
        %2183 = vmatpush1.msra.mxu0 0.0
        %2184 = vmatprep.subr.mxu0 0.0
        %2185 = vmatpush1.msra.mxu0 0.0
        %2186 = vmatprep.subr.mxu0 0.0
        %2187 = vmatpush1.msra.mxu0 0.0
        %2188 = vmatprep.subr.mxu0 0.0
        %2189 = vmatpush1.msra.mxu0 0.0
        %2190 = vmatprep.subr.mxu0 0.0
        %2191 = vmatpush1.msra.mxu0 0.0
        %2192 = vmatprep.subr.mxu0 0.0
        %2193 = vmatpush1.msra.mxu0 0.0
        %2194 = vmatprep.subr.mxu0 0.0
        %2195 = vmatpush1.msra.mxu0 0.0
        %2196 = vmatprep.subr.mxu0 0.0
        %2197 = vmatpush1.msra.mxu0 0.0
        %2198 = vmatprep.mubr.f32.mxu0 0.0
        %2199 = vmatmul.mubr.f32.gmra.mrb[0].mxu0 %v641
        %v2200 = vpop.f32.mrb[0].mxu0
        %v2201 = vadd.f32 %v490, %v2200
        %v2202 = vpop.f32.mrb[0].mxu0
        %v2203 = vadd.f32 %v494, %v2202
        %2204 = vdwg.mxu0
        %2205 = vmatprep.subr.mxu0 %v284
        %2206 = vmatpush1.msra.mxu0 %v283
        %2207 = vmatprep.subr.mxu0 0.0
        %2208 = vmatpush1.msra.mxu0 0.0
        %2209 = vmatprep.subr.mxu0 0.0
        %2210 = vmatpush1.msra.mxu0 0.0
        %2211 = vmatprep.subr.mxu0 0.0
        %2212 = vmatpush1.msra.mxu0 0.0
        %2213 = vmatprep.subr.mxu0 0.0
        %2214 = vmatpush1.msra.mxu0 0.0
        %2215 = vmatprep.subr.mxu0 0.0
        %2216 = vmatpush1.msra.mxu0 0.0
        %2217 = vmatprep.subr.mxu0 0.0
        %2218 = vmatpush1.msra.mxu0 0.0
        %2219 = vmatprep.subr.mxu0 0.0
        %2220 = vmatpush1.msra.mxu0 0.0
        %2221 = vmatprep.subr.mxu0 0.0
        %2222 = vmatpush1.msra.mxu0 0.0
        %2223 = vmatprep.subr.mxu0 0.0
        %2224 = vmatpush1.msra.mxu0 0.0
        %2225 = vmatprep.subr.mxu0 0.0
        %2226 = vmatpush1.msra.mxu0 0.0
        %2227 = vmatprep.subr.mxu0 0.0
        %2228 = vmatpush1.msra.mxu0 0.0
        %2229 = vmatprep.subr.mxu0 0.0
        %2230 = vmatpush1.msra.mxu0 0.0
        %2231 = vmatprep.subr.mxu0 0.0
        %2232 = vmatpush1.msra.mxu0 0.0
        %2233 = vmatprep.subr.mxu0 0.0
        %2234 = vmatpush1.msra.mxu0 0.0
        %2235 = vmatprep.subr.mxu0 0.0
        %2236 = vmatpush1.msra.mxu0 0.0
        %2237 = vmatprep.subr.mxu0 0.0
        %2238 = vmatpush1.msra.mxu0 0.0
        %2239 = vmatprep.subr.mxu0 0.0
        %2240 = vmatpush1.msra.mxu0 0.0
        %2241 = vmatprep.subr.mxu0 0.0
        %2242 = vmatpush1.msra.mxu0 0.0
        %2243 = vmatprep.subr.mxu0 0.0
        %2244 = vmatpush1.msra.mxu0 0.0
        %2245 = vmatprep.subr.mxu0 0.0
        %2246 = vmatpush1.msra.mxu0 0.0
        %2247 = vmatprep.subr.mxu0 0.0
        %2248 = vmatpush1.msra.mxu0 0.0
        %2249 = vmatprep.subr.mxu0 0.0
        %2250 = vmatpush1.msra.mxu0 0.0
        %2251 = vmatprep.subr.mxu0 0.0
        %2252 = vmatpush1.msra.mxu0 0.0
        %2253 = vmatprep.subr.mxu0 0.0
        %2254 = vmatpush1.msra.mxu0 0.0
        %2255 = vmatprep.subr.mxu0 0.0
        %2256 = vmatpush1.msra.mxu0 0.0
        %2257 = vmatprep.subr.mxu0 0.0
        %2258 = vmatpush1.msra.mxu0 0.0
        %2259 = vmatprep.subr.mxu0 0.0
        %2260 = vmatpush1.msra.mxu0 0.0
        %2261 = vmatprep.subr.mxu0 0.0
        %2262 = vmatpush1.msra.mxu0 0.0
        %2263 = vmatprep.subr.mxu0 0.0
        %2264 = vmatpush1.msra.mxu0 0.0
        %2265 = vmatprep.subr.mxu0 0.0
        %2266 = vmatpush1.msra.mxu0 0.0
        %2267 = vmatprep.subr.mxu0 0.0
        %2268 = vmatpush1.msra.mxu0 0.0
        %2269 = vmatprep.mubr.f32.mxu0 0.0
        %2270 = vmatmul.mubr.f32.gmra.mrb[0].mxu0 %v641
        %v2271 = vpop.f32.mrb[0].mxu0
        %v2272 = vadd.f32 %v498, %v2271
        %v2273 = vpop.f32.mrb[0].mxu0
        %v2274 = vadd.f32 %v502, %v2273
        %2275 = vdwg.mxu0
        %2276 = vmatprep.subr.mxu0 %v286
        %2277 = vmatpush1.msra.mxu0 %v285
        %2278 = vmatprep.subr.mxu0 0.0
        %2279 = vmatpush1.msra.mxu0 0.0
        %2280 = vmatprep.subr.mxu0 0.0
        %2281 = vmatpush1.msra.mxu0 0.0
        %2282 = vmatprep.subr.mxu0 0.0
        %2283 = vmatpush1.msra.mxu0 0.0
        %2284 = vmatprep.subr.mxu0 0.0
        %2285 = vmatpush1.msra.mxu0 0.0
        %2286 = vmatprep.subr.mxu0 0.0
        %2287 = vmatpush1.msra.mxu0 0.0
        %2288 = vmatprep.subr.mxu0 0.0
        %2289 = vmatpush1.msra.mxu0 0.0
        %2290 = vmatprep.subr.mxu0 0.0
        %2291 = vmatpush1.msra.mxu0 0.0
        %2292 = vmatprep.subr.mxu0 0.0
        %2293 = vmatpush1.msra.mxu0 0.0
        %2294 = vmatprep.subr.mxu0 0.0
        %2295 = vmatpush1.msra.mxu0 0.0
        %2296 = vmatprep.subr.mxu0 0.0
        %2297 = vmatpush1.msra.mxu0 0.0
        %2298 = vmatprep.subr.mxu0 0.0
        %2299 = vmatpush1.msra.mxu0 0.0
        %2300 = vmatprep.subr.mxu0 0.0
        %2301 = vmatpush1.msra.mxu0 0.0
        %2302 = vmatprep.subr.mxu0 0.0
        %2303 = vmatpush1.msra.mxu0 0.0
        %2304 = vmatprep.subr.mxu0 0.0
        %2305 = vmatpush1.msra.mxu0 0.0
        %2306 = vmatprep.subr.mxu0 0.0
        %2307 = vmatpush1.msra.mxu0 0.0
        %2308 = vmatprep.subr.mxu0 0.0
        %2309 = vmatpush1.msra.mxu0 0.0
        %2310 = vmatprep.subr.mxu0 0.0
        %2311 = vmatpush1.msra.mxu0 0.0
        %2312 = vmatprep.subr.mxu0 0.0
        %2313 = vmatpush1.msra.mxu0 0.0
        %2314 = vmatprep.subr.mxu0 0.0
        %2315 = vmatpush1.msra.mxu0 0.0
        %2316 = vmatprep.subr.mxu0 0.0
        %2317 = vmatpush1.msra.mxu0 0.0
        %2318 = vmatprep.subr.mxu0 0.0
        %2319 = vmatpush1.msra.mxu0 0.0
        %2320 = vmatprep.subr.mxu0 0.0
        %2321 = vmatpush1.msra.mxu0 0.0
        %2322 = vmatprep.subr.mxu0 0.0
        %2323 = vmatpush1.msra.mxu0 0.0
        %2324 = vmatprep.subr.mxu0 0.0
        %2325 = vmatpush1.msra.mxu0 0.0
        %2326 = vmatprep.subr.mxu0 0.0
        %2327 = vmatpush1.msra.mxu0 0.0
        %2328 = vmatprep.subr.mxu0 0.0
        %2329 = vmatpush1.msra.mxu0 0.0
        %2330 = vmatprep.subr.mxu0 0.0
        %2331 = vmatpush1.msra.mxu0 0.0
        %2332 = vmatprep.subr.mxu0 0.0
        %2333 = vmatpush1.msra.mxu0 0.0
        %2334 = vmatprep.subr.mxu0 0.0
        %2335 = vmatpush1.msra.mxu0 0.0
        %2336 = vmatprep.subr.mxu0 0.0
        %2337 = vmatpush1.msra.mxu0 0.0
        %2338 = vmatprep.subr.mxu0 0.0
        %2339 = vmatpush1.msra.mxu0 0.0
        %2340 = vmatprep.mubr.f32.mxu0 0.0
        %2341 = vmatmul.mubr.f32.gmra.mrb[0].mxu0 %v641
        %v2342 = vpop.f32.mrb[0].mxu0
        %v2343 = vadd.f32 %v506, %v2342
        %v2344 = vpop.f32.mrb[0].mxu0
        %v2345 = vadd.f32 %v510, %v2344
        %2346 = vdwg.mxu0
        %2347 = vmatprep.subr.mxu0 %v288
        %2348 = vmatpush1.msra.mxu0 %v287
        %2349 = vmatprep.subr.mxu0 0.0
        %2350 = vmatpush1.msra.mxu0 0.0
        %2351 = vmatprep.subr.mxu0 0.0
        %2352 = vmatpush1.msra.mxu0 0.0
        %2353 = vmatprep.subr.mxu0 0.0
        %2354 = vmatpush1.msra.mxu0 0.0
        %2355 = vmatprep.subr.mxu0 0.0
        %2356 = vmatpush1.msra.mxu0 0.0
        %2357 = vmatprep.subr.mxu0 0.0
        %2358 = vmatpush1.msra.mxu0 0.0
        %2359 = vmatprep.subr.mxu0 0.0
        %2360 = vmatpush1.msra.mxu0 0.0
        %2361 = vmatprep.subr.mxu0 0.0
        %2362 = vmatpush1.msra.mxu0 0.0
        %2363 = vmatprep.subr.mxu0 0.0
        %2364 = vmatpush1.msra.mxu0 0.0
        %2365 = vmatprep.subr.mxu0 0.0
        %2366 = vmatpush1.msra.mxu0 0.0
        %2367 = vmatprep.subr.mxu0 0.0
        %2368 = vmatpush1.msra.mxu0 0.0
        %2369 = vmatprep.subr.mxu0 0.0
        %2370 = vmatpush1.msra.mxu0 0.0
        %2371 = vmatprep.subr.mxu0 0.0
        %2372 = vmatpush1.msra.mxu0 0.0
        %2373 = vmatprep.subr.mxu0 0.0
        %2374 = vmatpush1.msra.mxu0 0.0
        %2375 = vmatprep.subr.mxu0 0.0
        %2376 = vmatpush1.msra.mxu0 0.0
        %2377 = vmatprep.subr.mxu0 0.0
        %2378 = vmatpush1.msra.mxu0 0.0
        %2379 = vmatprep.subr.mxu0 0.0
        %2380 = vmatpush1.msra.mxu0 0.0
        %2381 = vmatprep.subr.mxu0 0.0
        %2382 = vmatpush1.msra.mxu0 0.0
        %2383 = vmatprep.subr.mxu0 0.0
        %2384 = vmatpush1.msra.mxu0 0.0
        %2385 = vmatprep.subr.mxu0 0.0
        %2386 = vmatpush1.msra.mxu0 0.0
        %2387 = vmatprep.subr.mxu0 0.0
        %2388 = vmatpush1.msra.mxu0 0.0
        %2389 = vmatprep.subr.mxu0 0.0
        %2390 = vmatpush1.msra.mxu0 0.0
        %2391 = vmatprep.subr.mxu0 0.0
        %2392 = vmatpush1.msra.mxu0 0.0
        %2393 = vmatprep.subr.mxu0 0.0
        %2394 = vmatpush1.msra.mxu0 0.0
        %2395 = vmatprep.subr.mxu0 0.0
        %2396 = vmatpush1.msra.mxu0 0.0
        %2397 = vmatprep.subr.mxu0 0.0
        %2398 = vmatpush1.msra.mxu0 0.0
        %2399 = vmatprep.subr.mxu0 0.0
        %2400 = vmatpush1.msra.mxu0 0.0
        %2401 = vmatprep.subr.mxu0 0.0
        %2402 = vmatpush1.msra.mxu0 0.0
        %2403 = vmatprep.subr.mxu0 0.0
        %2404 = vmatpush1.msra.mxu0 0.0
        %2405 = vmatprep.subr.mxu0 0.0
        %2406 = vmatpush1.msra.mxu0 0.0
        %2407 = vmatprep.subr.mxu0 0.0
        %2408 = vmatpush1.msra.mxu0 0.0
        %2409 = vmatprep.subr.mxu0 0.0
        %2410 = vmatpush1.msra.mxu0 0.0
        %2411 = vmatprep.mubr.f32.mxu0 0.0
        %2412 = vmatmul.mubr.f32.gmra.mrb[0].mxu0 %v641
        %v2413 = vpop.f32.mrb[0].mxu0
        %v2414 = vadd.f32 %v514, %v2413
        %v2415 = vpop.f32.mrb[0].mxu0
        %v2416 = vadd.f32 %v518, %v2415
        %2417 = vdwg.mxu0
        %2418 = vmatprep.subr.mxu0 %v290
        %2419 = vmatpush1.msra.mxu0 %v289
        %2420 = vmatprep.subr.mxu0 0.0
        %2421 = vmatpush1.msra.mxu0 0.0
        %2422 = vmatprep.subr.mxu0 0.0
        %2423 = vmatpush1.msra.mxu0 0.0
        %2424 = vmatprep.subr.mxu0 0.0
        %2425 = vmatpush1.msra.mxu0 0.0
        %2426 = vmatprep.subr.mxu0 0.0
        %2427 = vmatpush1.msra.mxu0 0.0
        %2428 = vmatprep.subr.mxu0 0.0
        %2429 = vmatpush1.msra.mxu0 0.0
        %2430 = vmatprep.subr.mxu0 0.0
        %2431 = vmatpush1.msra.mxu0 0.0
        %2432 = vmatprep.subr.mxu0 0.0
        %2433 = vmatpush1.msra.mxu0 0.0
        %2434 = vmatprep.subr.mxu0 0.0
        %2435 = vmatpush1.msra.mxu0 0.0
        %2436 = vmatprep.subr.mxu0 0.0
        %2437 = vmatpush1.msra.mxu0 0.0
        %2438 = vmatprep.subr.mxu0 0.0
        %2439 = vmatpush1.msra.mxu0 0.0
        %2440 = vmatprep.subr.mxu0 0.0
        %2441 = vmatpush1.msra.mxu0 0.0
        %2442 = vmatprep.subr.mxu0 0.0
        %2443 = vmatpush1.msra.mxu0 0.0
        %2444 = vmatprep.subr.mxu0 0.0
        %2445 = vmatpush1.msra.mxu0 0.0
        %2446 = vmatprep.subr.mxu0 0.0
        %2447 = vmatpush1.msra.mxu0 0.0
        %2448 = vmatprep.subr.mxu0 0.0
        %2449 = vmatpush1.msra.mxu0 0.0
        %2450 = vmatprep.subr.mxu0 0.0
        %2451 = vmatpush1.msra.mxu0 0.0
        %2452 = vmatprep.subr.mxu0 0.0
        %2453 = vmatpush1.msra.mxu0 0.0
        %2454 = vmatprep.subr.mxu0 0.0
        %2455 = vmatpush1.msra.mxu0 0.0
        %2456 = vmatprep.subr.mxu0 0.0
        %2457 = vmatpush1.msra.mxu0 0.0
        %2458 = vmatprep.subr.mxu0 0.0
        %2459 = vmatpush1.msra.mxu0 0.0
        %2460 = vmatprep.subr.mxu0 0.0
        %2461 = vmatpush1.msra.mxu0 0.0
        %2462 = vmatprep.subr.mxu0 0.0
        %2463 = vmatpush1.msra.mxu0 0.0
        %2464 = vmatprep.subr.mxu0 0.0
        %2465 = vmatpush1.msra.mxu0 0.0
        %2466 = vmatprep.subr.mxu0 0.0
        %2467 = vmatpush1.msra.mxu0 0.0
        %2468 = vmatprep.subr.mxu0 0.0
        %2469 = vmatpush1.msra.mxu0 0.0
        %2470 = vmatprep.subr.mxu0 0.0
        %2471 = vmatpush1.msra.mxu0 0.0
        %2472 = vmatprep.subr.mxu0 0.0
        %2473 = vmatpush1.msra.mxu0 0.0
        %2474 = vmatprep.subr.mxu0 0.0
        %2475 = vmatpush1.msra.mxu0 0.0
        %2476 = vmatprep.subr.mxu0 0.0
        %2477 = vmatpush1.msra.mxu0 0.0
        %2478 = vmatprep.subr.mxu0 0.0
        %2479 = vmatpush1.msra.mxu0 0.0
        %2480 = vmatprep.subr.mxu0 0.0
        %2481 = vmatpush1.msra.mxu0 0.0
        %2482 = vmatprep.mubr.f32.mxu0 0.0
        %2483 = vmatmul.mubr.f32.gmra.mrb[0].mxu0 %v641
        %v2484 = vpop.f32.mrb[0].mxu0
        %v2485 = vadd.f32 %v522, %v2484
        %v2486 = vpop.f32.mrb[0].mxu0
        %v2487 = vadd.f32 %v526, %v2486
        %2488 = vdwg.mxu0
        %2489 = vmatprep.subr.mxu0 %v292
        %2490 = vmatpush1.msra.mxu0 %v291
        %2491 = vmatprep.subr.mxu0 0.0
        %2492 = vmatpush1.msra.mxu0 0.0
        %2493 = vmatprep.subr.mxu0 0.0
        %2494 = vmatpush1.msra.mxu0 0.0
        %2495 = vmatprep.subr.mxu0 0.0
        %2496 = vmatpush1.msra.mxu0 0.0
        %2497 = vmatprep.subr.mxu0 0.0
        %2498 = vmatpush1.msra.mxu0 0.0
        %2499 = vmatprep.subr.mxu0 0.0
        %2500 = vmatpush1.msra.mxu0 0.0
        %2501 = vmatprep.subr.mxu0 0.0
        %2502 = vmatpush1.msra.mxu0 0.0
        %2503 = vmatprep.subr.mxu0 0.0
        %2504 = vmatpush1.msra.mxu0 0.0
        %2505 = vmatprep.subr.mxu0 0.0
        %2506 = vmatpush1.msra.mxu0 0.0
        %2507 = vmatprep.subr.mxu0 0.0
        %2508 = vmatpush1.msra.mxu0 0.0
        %2509 = vmatprep.subr.mxu0 0.0
        %2510 = vmatpush1.msra.mxu0 0.0
        %2511 = vmatprep.subr.mxu0 0.0
        %2512 = vmatpush1.msra.mxu0 0.0
        %2513 = vmatprep.subr.mxu0 0.0
        %2514 = vmatpush1.msra.mxu0 0.0
        %2515 = vmatprep.subr.mxu0 0.0
        %2516 = vmatpush1.msra.mxu0 0.0
        %2517 = vmatprep.subr.mxu0 0.0
        %2518 = vmatpush1.msra.mxu0 0.0
        %2519 = vmatprep.subr.mxu0 0.0
        %2520 = vmatpush1.msra.mxu0 0.0
        %2521 = vmatprep.subr.mxu0 0.0
        %2522 = vmatpush1.msra.mxu0 0.0
        %2523 = vmatprep.subr.mxu0 0.0
        %2524 = vmatpush1.msra.mxu0 0.0
        %2525 = vmatprep.subr.mxu0 0.0
        %2526 = vmatpush1.msra.mxu0 0.0
        %2527 = vmatprep.subr.mxu0 0.0
        %2528 = vmatpush1.msra.mxu0 0.0
        %2529 = vmatprep.subr.mxu0 0.0
        %2530 = vmatpush1.msra.mxu0 0.0
        %2531 = vmatprep.subr.mxu0 0.0
        %2532 = vmatpush1.msra.mxu0 0.0
        %2533 = vmatprep.subr.mxu0 0.0
        %2534 = vmatpush1.msra.mxu0 0.0
        %2535 = vmatprep.subr.mxu0 0.0
        %2536 = vmatpush1.msra.mxu0 0.0
        %2537 = vmatprep.subr.mxu0 0.0
        %2538 = vmatpush1.msra.mxu0 0.0
        %2539 = vmatprep.subr.mxu0 0.0
        %2540 = vmatpush1.msra.mxu0 0.0
        %2541 = vmatprep.subr.mxu0 0.0
        %2542 = vmatpush1.msra.mxu0 0.0
        %2543 = vmatprep.subr.mxu0 0.0
        %2544 = vmatpush1.msra.mxu0 0.0
        %2545 = vmatprep.subr.mxu0 0.0
        %2546 = vmatpush1.msra.mxu0 0.0
        %2547 = vmatprep.subr.mxu0 0.0
        %2548 = vmatpush1.msra.mxu0 0.0
        %2549 = vmatprep.subr.mxu0 0.0
        %2550 = vmatpush1.msra.mxu0 0.0
        %2551 = vmatprep.subr.mxu0 0.0
        %2552 = vmatpush1.msra.mxu0 0.0
        %2553 = vmatprep.mubr.f32.mxu0 0.0
        %2554 = vmatmul.mubr.f32.gmra.mrb[0].mxu0 %v641
        %v2555 = vpop.f32.mrb[0].mxu0
        %v2556 = vadd.f32 %v530, %v2555
        %v2557 = vpop.f32.mrb[0].mxu0
        %v2558 = vadd.f32 %v534, %v2557
        %2559 = vdwg.mxu0
        %2560 = vmatprep.subr.mxu0 %v294
        %2561 = vmatpush1.msra.mxu0 %v293
        %2562 = vmatprep.subr.mxu0 0.0
        %2563 = vmatpush1.msra.mxu0 0.0
        %2564 = vmatprep.subr.mxu0 0.0
        %2565 = vmatpush1.msra.mxu0 0.0
        %2566 = vmatprep.subr.mxu0 0.0
        %2567 = vmatpush1.msra.mxu0 0.0
        %2568 = vmatprep.subr.mxu0 0.0
        %2569 = vmatpush1.msra.mxu0 0.0
        %2570 = vmatprep.subr.mxu0 0.0
        %2571 = vmatpush1.msra.mxu0 0.0
        %2572 = vmatprep.subr.mxu0 0.0
        %2573 = vmatpush1.msra.mxu0 0.0
        %2574 = vmatprep.subr.mxu0 0.0
        %2575 = vmatpush1.msra.mxu0 0.0
        %2576 = vmatprep.subr.mxu0 0.0
        %2577 = vmatpush1.msra.mxu0 0.0
        %2578 = vmatprep.subr.mxu0 0.0
        %2579 = vmatpush1.msra.mxu0 0.0
        %2580 = vmatprep.subr.mxu0 0.0
        %2581 = vmatpush1.msra.mxu0 0.0
        %2582 = vmatprep.subr.mxu0 0.0
        %2583 = vmatpush1.msra.mxu0 0.0
        %2584 = vmatprep.subr.mxu0 0.0
        %2585 = vmatpush1.msra.mxu0 0.0
        %2586 = vmatprep.subr.mxu0 0.0
        %2587 = vmatpush1.msra.mxu0 0.0
        %2588 = vmatprep.subr.mxu0 0.0
        %2589 = vmatpush1.msra.mxu0 0.0
        %2590 = vmatprep.subr.mxu0 0.0
        %2591 = vmatpush1.msra.mxu0 0.0
        %2592 = vmatprep.subr.mxu0 0.0
        %2593 = vmatpush1.msra.mxu0 0.0
        %2594 = vmatprep.subr.mxu0 0.0
        %2595 = vmatpush1.msra.mxu0 0.0
        %2596 = vmatprep.subr.mxu0 0.0
        %2597 = vmatpush1.msra.mxu0 0.0
        %2598 = vmatprep.subr.mxu0 0.0
        %2599 = vmatpush1.msra.mxu0 0.0
        %2600 = vmatprep.subr.mxu0 0.0
        %2601 = vmatpush1.msra.mxu0 0.0
        %2602 = vmatprep.subr.mxu0 0.0
        %2603 = vmatpush1.msra.mxu0 0.0
        %2604 = vmatprep.subr.mxu0 0.0
        %2605 = vmatpush1.msra.mxu0 0.0
        %2606 = vmatprep.subr.mxu0 0.0
        %2607 = vmatpush1.msra.mxu0 0.0
        %2608 = vmatprep.subr.mxu0 0.0
        %2609 = vmatpush1.msra.mxu0 0.0
        %2610 = vmatprep.subr.mxu0 0.0
        %2611 = vmatpush1.msra.mxu0 0.0
        %2612 = vmatprep.subr.mxu0 0.0
        %2613 = vmatpush1.msra.mxu0 0.0
        %2614 = vmatprep.subr.mxu0 0.0
        %2615 = vmatpush1.msra.mxu0 0.0
        %2616 = vmatprep.subr.mxu0 0.0
        %2617 = vmatpush1.msra.mxu0 0.0
        %2618 = vmatprep.subr.mxu0 0.0
        %2619 = vmatpush1.msra.mxu0 0.0
        %2620 = vmatprep.subr.mxu0 0.0
        %2621 = vmatpush1.msra.mxu0 0.0
        %2622 = vmatprep.subr.mxu0 0.0
        %2623 = vmatpush1.msra.mxu0 0.0
        %2624 = vmatprep.mubr.f32.mxu0 0.0
        %2625 = vmatmul.mubr.f32.gmra.mrb[0].mxu0 %v641
        %v2626 = vpop.f32.mrb[0].mxu0
        %v2627 = vadd.f32 %v538, %v2626
        %v2628 = vpop.f32.mrb[0].mxu0
        %v2629 = vadd.f32 %v542, %v2628
        %2630 = vdwg.mxu0
        %2631 = vmatprep.subr.mxu0 %v296
        %2632 = vmatpush1.msra.mxu0 %v295
        %2633 = vmatprep.subr.mxu0 0.0
        %2634 = vmatpush1.msra.mxu0 0.0
        %2635 = vmatprep.subr.mxu0 0.0
        %2636 = vmatpush1.msra.mxu0 0.0
        %2637 = vmatprep.subr.mxu0 0.0
        %2638 = vmatpush1.msra.mxu0 0.0
        %2639 = vmatprep.subr.mxu0 0.0
        %2640 = vmatpush1.msra.mxu0 0.0
        %2641 = vmatprep.subr.mxu0 0.0
        %2642 = vmatpush1.msra.mxu0 0.0
        %2643 = vmatprep.subr.mxu0 0.0
        %2644 = vmatpush1.msra.mxu0 0.0
        %2645 = vmatprep.subr.mxu0 0.0
        %2646 = vmatpush1.msra.mxu0 0.0
        %2647 = vmatprep.subr.mxu0 0.0
        %2648 = vmatpush1.msra.mxu0 0.0
        %2649 = vmatprep.subr.mxu0 0.0
        %2650 = vmatpush1.msra.mxu0 0.0
        %2651 = vmatprep.subr.mxu0 0.0
        %2652 = vmatpush1.msra.mxu0 0.0
        %2653 = vmatprep.subr.mxu0 0.0
        %2654 = vmatpush1.msra.mxu0 0.0
        %2655 = vmatprep.subr.mxu0 0.0
        %2656 = vmatpush1.msra.mxu0 0.0
        %2657 = vmatprep.subr.mxu0 0.0
        %2658 = vmatpush1.msra.mxu0 0.0
        %2659 = vmatprep.subr.mxu0 0.0
        %2660 = vmatpush1.msra.mxu0 0.0
        %2661 = vmatprep.subr.mxu0 0.0
        %2662 = vmatpush1.msra.mxu0 0.0
        %2663 = vmatprep.subr.mxu0 0.0
        %2664 = vmatpush1.msra.mxu0 0.0
        %2665 = vmatprep.subr.mxu0 0.0
        %2666 = vmatpush1.msra.mxu0 0.0
        %2667 = vmatprep.subr.mxu0 0.0
        %2668 = vmatpush1.msra.mxu0 0.0
        %2669 = vmatprep.subr.mxu0 0.0
        %2670 = vmatpush1.msra.mxu0 0.0
        %2671 = vmatprep.subr.mxu0 0.0
        %2672 = vmatpush1.msra.mxu0 0.0
        %2673 = vmatprep.subr.mxu0 0.0
        %2674 = vmatpush1.msra.mxu0 0.0
        %2675 = vmatprep.subr.mxu0 0.0
        %2676 = vmatpush1.msra.mxu0 0.0
        %2677 = vmatprep.subr.mxu0 0.0
        %2678 = vmatpush1.msra.mxu0 0.0
        %2679 = vmatprep.subr.mxu0 0.0
        %2680 = vmatpush1.msra.mxu0 0.0
        %2681 = vmatprep.subr.mxu0 0.0
        %2682 = vmatpush1.msra.mxu0 0.0
        %2683 = vmatprep.subr.mxu0 0.0
        %2684 = vmatpush1.msra.mxu0 0.0
        %2685 = vmatprep.subr.mxu0 0.0
        %2686 = vmatpush1.msra.mxu0 0.0
        %2687 = vmatprep.subr.mxu0 0.0
        %2688 = vmatpush1.msra.mxu0 0.0
        %2689 = vmatprep.subr.mxu0 0.0
        %2690 = vmatpush1.msra.mxu0 0.0
        %2691 = vmatprep.subr.mxu0 0.0
        %2692 = vmatpush1.msra.mxu0 0.0
        %2693 = vmatprep.subr.mxu0 0.0
        %2694 = vmatpush1.msra.mxu0 0.0
        %2695 = vmatprep.mubr.f32.mxu0 0.0
        %2696 = vmatmul.mubr.f32.gmra.mrb[0].mxu0 %v641
        %v2697 = vpop.f32.mrb[0].mxu0
        %v2698 = vadd.f32 %v546, %v2697
        %v2699 = vpop.f32.mrb[0].mxu0
        %v2700 = vadd.f32 %v550, %v2699
        %2701 = vdwg.mxu0
        %2702 = vmatprep.subr.mxu0 %v298
        %2703 = vmatpush1.msra.mxu0 %v297
        %2704 = vmatprep.subr.mxu0 0.0
        %2705 = vmatpush1.msra.mxu0 0.0
        %2706 = vmatprep.subr.mxu0 0.0
        %2707 = vmatpush1.msra.mxu0 0.0
        %2708 = vmatprep.subr.mxu0 0.0
        %2709 = vmatpush1.msra.mxu0 0.0
        %2710 = vmatprep.subr.mxu0 0.0
        %2711 = vmatpush1.msra.mxu0 0.0
        %2712 = vmatprep.subr.mxu0 0.0
        %2713 = vmatpush1.msra.mxu0 0.0
        %2714 = vmatprep.subr.mxu0 0.0
        %2715 = vmatpush1.msra.mxu0 0.0
        %2716 = vmatprep.subr.mxu0 0.0
        %2717 = vmatpush1.msra.mxu0 0.0
        %2718 = vmatprep.subr.mxu0 0.0
        %2719 = vmatpush1.msra.mxu0 0.0
        %2720 = vmatprep.subr.mxu0 0.0
        %2721 = vmatpush1.msra.mxu0 0.0
        %2722 = vmatprep.subr.mxu0 0.0
        %2723 = vmatpush1.msra.mxu0 0.0
        %2724 = vmatprep.subr.mxu0 0.0
        %2725 = vmatpush1.msra.mxu0 0.0
        %2726 = vmatprep.subr.mxu0 0.0
        %2727 = vmatpush1.msra.mxu0 0.0
        %2728 = vmatprep.subr.mxu0 0.0
        %2729 = vmatpush1.msra.mxu0 0.0
        %2730 = vmatprep.subr.mxu0 0.0
        %2731 = vmatpush1.msra.mxu0 0.0
        %2732 = vmatprep.subr.mxu0 0.0
        %2733 = vmatpush1.msra.mxu0 0.0
        %2734 = vmatprep.subr.mxu0 0.0
        %2735 = vmatpush1.msra.mxu0 0.0
        %2736 = vmatprep.subr.mxu0 0.0
        %2737 = vmatpush1.msra.mxu0 0.0
        %2738 = vmatprep.subr.mxu0 0.0
        %2739 = vmatpush1.msra.mxu0 0.0
        %2740 = vmatprep.subr.mxu0 0.0
        %2741 = vmatpush1.msra.mxu0 0.0
        %2742 = vmatprep.subr.mxu0 0.0
        %2743 = vmatpush1.msra.mxu0 0.0
        %2744 = vmatprep.subr.mxu0 0.0
        %2745 = vmatpush1.msra.mxu0 0.0
        %2746 = vmatprep.subr.mxu0 0.0
        %2747 = vmatpush1.msra.mxu0 0.0
        %2748 = vmatprep.subr.mxu0 0.0
        %2749 = vmatpush1.msra.mxu0 0.0
        %2750 = vmatprep.subr.mxu0 0.0
        %2751 = vmatpush1.msra.mxu0 0.0
        %2752 = vmatprep.subr.mxu0 0.0
        %2753 = vmatpush1.msra.mxu0 0.0
        %2754 = vmatprep.subr.mxu0 0.0
        %2755 = vmatpush1.msra.mxu0 0.0
        %2756 = vmatprep.subr.mxu0 0.0
        %2757 = vmatpush1.msra.mxu0 0.0
        %2758 = vmatprep.subr.mxu0 0.0
        %2759 = vmatpush1.msra.mxu0 0.0
        %2760 = vmatprep.subr.mxu0 0.0
        %2761 = vmatpush1.msra.mxu0 0.0
        %2762 = vmatprep.subr.mxu0 0.0
        %2763 = vmatpush1.msra.mxu0 0.0
        %2764 = vmatprep.subr.mxu0 0.0
        %2765 = vmatpush1.msra.mxu0 0.0
        %2766 = vmatprep.mubr.f32.mxu0 0.0
        %2767 = vmatmul.mubr.f32.gmra.mrb[0].mxu0 %v641
        %v2768 = vpop.f32.mrb[0].mxu0
        %v2769 = vadd.f32 %v554, %v2768
        %v2770 = vpop.f32.mrb[0].mxu0
        %v2771 = vadd.f32 %v558, %v2770
        %2772 = vdwg.mxu0
        %2773 = vmatprep.subr.mxu0 %v300
        %2774 = vmatpush1.msra.mxu0 %v299
        %2775 = vmatprep.subr.mxu0 0.0
        %2776 = vmatpush1.msra.mxu0 0.0
        %2777 = vmatprep.subr.mxu0 0.0
        %2778 = vmatpush1.msra.mxu0 0.0
        %2779 = vmatprep.subr.mxu0 0.0
        %2780 = vmatpush1.msra.mxu0 0.0
        %2781 = vmatprep.subr.mxu0 0.0
        %2782 = vmatpush1.msra.mxu0 0.0
        %2783 = vmatprep.subr.mxu0 0.0
        %2784 = vmatpush1.msra.mxu0 0.0
        %2785 = vmatprep.subr.mxu0 0.0
        %2786 = vmatpush1.msra.mxu0 0.0
        %2787 = vmatprep.subr.mxu0 0.0
        %2788 = vmatpush1.msra.mxu0 0.0
        %2789 = vmatprep.subr.mxu0 0.0
        %2790 = vmatpush1.msra.mxu0 0.0
        %2791 = vmatprep.subr.mxu0 0.0
        %2792 = vmatpush1.msra.mxu0 0.0
        %2793 = vmatprep.subr.mxu0 0.0
        %2794 = vmatpush1.msra.mxu0 0.0
        %2795 = vmatprep.subr.mxu0 0.0
        %2796 = vmatpush1.msra.mxu0 0.0
        %2797 = vmatprep.subr.mxu0 0.0
        %2798 = vmatpush1.msra.mxu0 0.0
        %2799 = vmatprep.subr.mxu0 0.0
        %2800 = vmatpush1.msra.mxu0 0.0
        %2801 = vmatprep.subr.mxu0 0.0
        %2802 = vmatpush1.msra.mxu0 0.0
        %2803 = vmatprep.subr.mxu0 0.0
        %2804 = vmatpush1.msra.mxu0 0.0
        %2805 = vmatprep.subr.mxu0 0.0
        %2806 = vmatpush1.msra.mxu0 0.0
        %2807 = vmatprep.subr.mxu0 0.0
        %2808 = vmatpush1.msra.mxu0 0.0
        %2809 = vmatprep.subr.mxu0 0.0
        %2810 = vmatpush1.msra.mxu0 0.0
        %2811 = vmatprep.subr.mxu0 0.0
        %2812 = vmatpush1.msra.mxu0 0.0
        %2813 = vmatprep.subr.mxu0 0.0
        %2814 = vmatpush1.msra.mxu0 0.0
        %2815 = vmatprep.subr.mxu0 0.0
        %2816 = vmatpush1.msra.mxu0 0.0
        %2817 = vmatprep.subr.mxu0 0.0
        %2818 = vmatpush1.msra.mxu0 0.0
        %2819 = vmatprep.subr.mxu0 0.0
        %2820 = vmatpush1.msra.mxu0 0.0
        %2821 = vmatprep.subr.mxu0 0.0
        %2822 = vmatpush1.msra.mxu0 0.0
        %2823 = vmatprep.subr.mxu0 0.0
        %2824 = vmatpush1.msra.mxu0 0.0
        %2825 = vmatprep.subr.mxu0 0.0
        %2826 = vmatpush1.msra.mxu0 0.0
        %2827 = vmatprep.subr.mxu0 0.0
        %2828 = vmatpush1.msra.mxu0 0.0
        %2829 = vmatprep.subr.mxu0 0.0
        %2830 = vmatpush1.msra.mxu0 0.0
        %2831 = vmatprep.subr.mxu0 0.0
        %2832 = vmatpush1.msra.mxu0 0.0
        %2833 = vmatprep.subr.mxu0 0.0
        %2834 = vmatpush1.msra.mxu0 0.0
        %2835 = vmatprep.subr.mxu0 0.0
        %2836 = vmatpush1.msra.mxu0 0.0
        %2837 = vmatprep.mubr.f32.mxu0 0.0
        %2838 = vmatmul.mubr.f32.gmra.mrb[0].mxu0 %v641
        %v2839 = vpop.f32.mrb[0].mxu0
        %v2840 = vadd.f32 %v562, %v2839
        %v2841 = vpop.f32.mrb[0].mxu0
        %v2842 = vadd.f32 %v566, %v2841
        %2843 = vdwg.mxu0
        %2844 = vmatprep.subr.mxu0 %v302
        %2845 = vmatpush1.msra.mxu0 %v301
        %2846 = vmatprep.subr.mxu0 0.0
        %2847 = vmatpush1.msra.mxu0 0.0
        %2848 = vmatprep.subr.mxu0 0.0
        %2849 = vmatpush1.msra.mxu0 0.0
        %2850 = vmatprep.subr.mxu0 0.0
        %2851 = vmatpush1.msra.mxu0 0.0
        %2852 = vmatprep.subr.mxu0 0.0
        %2853 = vmatpush1.msra.mxu0 0.0
        %2854 = vmatprep.subr.mxu0 0.0
        %2855 = vmatpush1.msra.mxu0 0.0
        %2856 = vmatprep.subr.mxu0 0.0
        %2857 = vmatpush1.msra.mxu0 0.0
        %2858 = vmatprep.subr.mxu0 0.0
        %2859 = vmatpush1.msra.mxu0 0.0
        %2860 = vmatprep.subr.mxu0 0.0
        %2861 = vmatpush1.msra.mxu0 0.0
        %2862 = vmatprep.subr.mxu0 0.0
        %2863 = vmatpush1.msra.mxu0 0.0
        %2864 = vmatprep.subr.mxu0 0.0
        %2865 = vmatpush1.msra.mxu0 0.0
        %2866 = vmatprep.subr.mxu0 0.0
        %2867 = vmatpush1.msra.mxu0 0.0
        %2868 = vmatprep.subr.mxu0 0.0
        %2869 = vmatpush1.msra.mxu0 0.0
        %2870 = vmatprep.subr.mxu0 0.0
        %2871 = vmatpush1.msra.mxu0 0.0
        %2872 = vmatprep.subr.mxu0 0.0
        %2873 = vmatpush1.msra.mxu0 0.0
        %2874 = vmatprep.subr.mxu0 0.0
        %2875 = vmatpush1.msra.mxu0 0.0
        %2876 = vmatprep.subr.mxu0 0.0
        %2877 = vmatpush1.msra.mxu0 0.0
        %2878 = vmatprep.subr.mxu0 0.0
        %2879 = vmatpush1.msra.mxu0 0.0
        %2880 = vmatprep.subr.mxu0 0.0
        %2881 = vmatpush1.msra.mxu0 0.0
        %2882 = vmatprep.subr.mxu0 0.0
        %2883 = vmatpush1.msra.mxu0 0.0
        %2884 = vmatprep.subr.mxu0 0.0
        %2885 = vmatpush1.msra.mxu0 0.0
        %2886 = vmatprep.subr.mxu0 0.0
        %2887 = vmatpush1.msra.mxu0 0.0
        %2888 = vmatprep.subr.mxu0 0.0
        %2889 = vmatpush1.msra.mxu0 0.0
        %2890 = vmatprep.subr.mxu0 0.0
        %2891 = vmatpush1.msra.mxu0 0.0
        %2892 = vmatprep.subr.mxu0 0.0
        %2893 = vmatpush1.msra.mxu0 0.0
        %2894 = vmatprep.subr.mxu0 0.0
        %2895 = vmatpush1.msra.mxu0 0.0
        %2896 = vmatprep.subr.mxu0 0.0
        %2897 = vmatpush1.msra.mxu0 0.0
        %2898 = vmatprep.subr.mxu0 0.0
        %2899 = vmatpush1.msra.mxu0 0.0
        %2900 = vmatprep.subr.mxu0 0.0
        %2901 = vmatpush1.msra.mxu0 0.0
        %2902 = vmatprep.subr.mxu0 0.0
        %2903 = vmatpush1.msra.mxu0 0.0
        %2904 = vmatprep.subr.mxu0 0.0
        %2905 = vmatpush1.msra.mxu0 0.0
        %2906 = vmatprep.subr.mxu0 0.0
        %2907 = vmatpush1.msra.mxu0 0.0
        %2908 = vmatprep.mubr.f32.mxu0 0.0
        %2909 = vmatmul.mubr.f32.gmra.mrb[0].mxu0 %v641
        %v2910 = vpop.f32.mrb[0].mxu0
        %v2911 = vadd.f32 %v570, %v2910
        %v2912 = vpop.f32.mrb[0].mxu0
        %v2913 = vadd.f32 %v574, %v2912
        %2914 = vdwg.mxu0
        %v2979 = vcombine.low %v710, %v712
        %v2980 = vcombine.low %v781, %v783
        %v2982 = vunpack.c.l.s4 1983009808
        %v2983 = vunpack.c.0.s8 %v2982
        %v2984 = vlaneseq
        %v2985 = vshrl.u32 %v2984, 7
        %v2986 = vsub.s32 %v2983, %v2985
        %v2987 = vrot.slane %v2979, %v2986
        %v2989 = vunpack.c.l.s4 1983009808
        %v2990 = vunpack.c.0.s8 %v2989
        %v2991 = vlaneseq
        %v2992 = vshrl.u32 %v2991, 7
        %v2993 = vsub.s32 %v2990, %v2992
        %v2994 = vrot.slane %v2980, %v2993
        %v2995 = vcombine.low %v2987, %v2994
        %v2996 = vcombine.low %v852, %v854
        %v2997 = vcombine.low %v923, %v925
        %v2999 = vunpack.c.l.s4 1983009808
        %v3000 = vunpack.c.0.s8 %v2999
        %v3001 = vlaneseq
        %v3002 = vshrl.u32 %v3001, 7
        %v3003 = vsub.s32 %v3000, %v3002
        %v3004 = vrot.slane %v2996, %v3003
        %v3006 = vunpack.c.l.s4 1983009808
        %v3007 = vunpack.c.0.s8 %v3006
        %v3008 = vlaneseq
        %v3009 = vshrl.u32 %v3008, 7
        %v3010 = vsub.s32 %v3007, %v3009
        %v3011 = vrot.slane %v2997, %v3010
        %v3012 = vcombine.low %v3004, %v3011
        %v3013 = vcombine.low %v994, %v996
        %v3014 = vcombine.low %v1065, %v1067
        %v3016 = vunpack.c.l.s4 1983009808
        %v3017 = vunpack.c.0.s8 %v3016
        %v3018 = vlaneseq
        %v3019 = vshrl.u32 %v3018, 7
        %v3020 = vsub.s32 %v3017, %v3019
        %v3021 = vrot.slane %v3013, %v3020
        %v3023 = vunpack.c.l.s4 1983009808
        %v3024 = vunpack.c.0.s8 %v3023
        %v3025 = vlaneseq
        %v3026 = vshrl.u32 %v3025, 7
        %v3027 = vsub.s32 %v3024, %v3026
        %v3028 = vrot.slane %v3014, %v3027
        %v3029 = vcombine.low %v3021, %v3028
        %v3030 = vcombine.low %v1136, %v1138
        %v3031 = vcombine.low %v1207, %v1209
        %v3033 = vunpack.c.l.s4 1983009808
        %v3034 = vunpack.c.0.s8 %v3033
        %v3035 = vlaneseq
        %v3036 = vshrl.u32 %v3035, 7
        %v3037 = vsub.s32 %v3034, %v3036
        %v3038 = vrot.slane %v3030, %v3037
        %v3040 = vunpack.c.l.s4 1983009808
        %v3041 = vunpack.c.0.s8 %v3040
        %v3042 = vlaneseq
        %v3043 = vshrl.u32 %v3042, 7
        %v3044 = vsub.s32 %v3041, %v3043
        %v3045 = vrot.slane %v3031, %v3044
        %v3046 = vcombine.low %v3038, %v3045
        %v3047 = vcombine.low %v1278, %v1280
        %v3048 = vcombine.low %v1349, %v1351
        %v3050 = vunpack.c.l.s4 1983009808
        %v3051 = vunpack.c.0.s8 %v3050
        %v3052 = vlaneseq
        %v3053 = vshrl.u32 %v3052, 7
        %v3054 = vsub.s32 %v3051, %v3053
        %v3055 = vrot.slane %v3047, %v3054
        %v3057 = vunpack.c.l.s4 1983009808
        %v3058 = vunpack.c.0.s8 %v3057
        %v3059 = vlaneseq
        %v3060 = vshrl.u32 %v3059, 7
        %v3061 = vsub.s32 %v3058, %v3060
        %v3062 = vrot.slane %v3048, %v3061
        %v3063 = vcombine.low %v3055, %v3062
        %v3064 = vcombine.low %v1420, %v1422
        %v3065 = vcombine.low %v1491, %v1493
        %v3067 = vunpack.c.l.s4 1983009808
        %v3068 = vunpack.c.0.s8 %v3067
        %v3069 = vlaneseq
        %v3070 = vshrl.u32 %v3069, 7
        %v3071 = vsub.s32 %v3068, %v3070
        %v3072 = vrot.slane %v3064, %v3071
        %v3074 = vunpack.c.l.s4 1983009808
        %v3075 = vunpack.c.0.s8 %v3074
        %v3076 = vlaneseq
        %v3077 = vshrl.u32 %v3076, 7
        %v3078 = vsub.s32 %v3075, %v3077
        %v3079 = vrot.slane %v3065, %v3078
        %v3080 = vcombine.low %v3072, %v3079
        %v3081 = vcombine.low %v1562, %v1564
        %v3082 = vcombine.low %v1633, %v1635
        %v3084 = vunpack.c.l.s4 1983009808
        %v3085 = vunpack.c.0.s8 %v3084
        %v3086 = vlaneseq
        %v3087 = vshrl.u32 %v3086, 7
        %v3088 = vsub.s32 %v3085, %v3087
        %v3089 = vrot.slane %v3081, %v3088
        %v3091 = vunpack.c.l.s4 1983009808
        %v3092 = vunpack.c.0.s8 %v3091
        %v3093 = vlaneseq
        %v3094 = vshrl.u32 %v3093, 7
        %v3095 = vsub.s32 %v3092, %v3094
        %v3096 = vrot.slane %v3082, %v3095
        %v3097 = vcombine.low %v3089, %v3096
        %v3098 = vcombine.low %v1704, %v1706
        %v3099 = vcombine.low %v1775, %v1777
        %v3101 = vunpack.c.l.s4 1983009808
        %v3102 = vunpack.c.0.s8 %v3101
        %v3103 = vlaneseq
        %v3104 = vshrl.u32 %v3103, 7
        %v3105 = vsub.s32 %v3102, %v3104
        %v3106 = vrot.slane %v3098, %v3105
        %v3108 = vunpack.c.l.s4 1983009808
        %v3109 = vunpack.c.0.s8 %v3108
        %v3110 = vlaneseq
        %v3111 = vshrl.u32 %v3110, 7
        %v3112 = vsub.s32 %v3109, %v3111
        %v3113 = vrot.slane %v3099, %v3112
        %v3114 = vcombine.low %v3106, %v3113
        %v3115 = vcombine.low %v1846, %v1848
        %v3116 = vcombine.low %v1917, %v1919
        %v3118 = vunpack.c.l.s4 1983009808
        %v3119 = vunpack.c.0.s8 %v3118
        %v3120 = vlaneseq
        %v3121 = vshrl.u32 %v3120, 7
        %v3122 = vsub.s32 %v3119, %v3121
        %v3123 = vrot.slane %v3115, %v3122
        %v3125 = vunpack.c.l.s4 1983009808
        %v3126 = vunpack.c.0.s8 %v3125
        %v3127 = vlaneseq
        %v3128 = vshrl.u32 %v3127, 7
        %v3129 = vsub.s32 %v3126, %v3128
        %v3130 = vrot.slane %v3116, %v3129
        %v3131 = vcombine.low %v3123, %v3130
        %v3132 = vcombine.low %v1988, %v1990
        %v3133 = vcombine.low %v2059, %v2061
        %v3135 = vunpack.c.l.s4 1983009808
        %v3136 = vunpack.c.0.s8 %v3135
        %v3137 = vlaneseq
        %v3138 = vshrl.u32 %v3137, 7
        %v3139 = vsub.s32 %v3136, %v3138
        %v3140 = vrot.slane %v3132, %v3139
        %v3142 = vunpack.c.l.s4 1983009808
        %v3143 = vunpack.c.0.s8 %v3142
        %v3144 = vlaneseq
        %v3145 = vshrl.u32 %v3144, 7
        %v3146 = vsub.s32 %v3143, %v3145
        %v3147 = vrot.slane %v3133, %v3146
        %v3148 = vcombine.low %v3140, %v3147
        %v3149 = vcombine.low %v2130, %v2132
        %v3150 = vcombine.low %v2201, %v2203
        %v3152 = vunpack.c.l.s4 1983009808
        %v3153 = vunpack.c.0.s8 %v3152
        %v3154 = vlaneseq
        %v3155 = vshrl.u32 %v3154, 7
        %v3156 = vsub.s32 %v3153, %v3155
        %v3157 = vrot.slane %v3149, %v3156
        %v3159 = vunpack.c.l.s4 1983009808
        %v3160 = vunpack.c.0.s8 %v3159
        %v3161 = vlaneseq
        %v3162 = vshrl.u32 %v3161, 7
        %v3163 = vsub.s32 %v3160, %v3162
        %v3164 = vrot.slane %v3150, %v3163
        %v3165 = vcombine.low %v3157, %v3164
        %v3166 = vcombine.low %v2272, %v2274
        %v3167 = vcombine.low %v2343, %v2345
        %v3169 = vunpack.c.l.s4 1983009808
        %v3170 = vunpack.c.0.s8 %v3169
        %v3171 = vlaneseq
        %v3172 = vshrl.u32 %v3171, 7
        %v3173 = vsub.s32 %v3170, %v3172
        %v3174 = vrot.slane %v3166, %v3173
        %v3176 = vunpack.c.l.s4 1983009808
        %v3177 = vunpack.c.0.s8 %v3176
        %v3178 = vlaneseq
        %v3179 = vshrl.u32 %v3178, 7
        %v3180 = vsub.s32 %v3177, %v3179
        %v3181 = vrot.slane %v3167, %v3180
        %v3182 = vcombine.low %v3174, %v3181
        %v3183 = vcombine.low %v2414, %v2416
        %v3184 = vcombine.low %v2485, %v2487
        %v3186 = vunpack.c.l.s4 1983009808
        %v3187 = vunpack.c.0.s8 %v3186
        %v3188 = vlaneseq
        %v3189 = vshrl.u32 %v3188, 7
        %v3190 = vsub.s32 %v3187, %v3189
        %v3191 = vrot.slane %v3183, %v3190
        %v3193 = vunpack.c.l.s4 1983009808
        %v3194 = vunpack.c.0.s8 %v3193
        %v3195 = vlaneseq
        %v3196 = vshrl.u32 %v3195, 7
        %v3197 = vsub.s32 %v3194, %v3196
        %v3198 = vrot.slane %v3184, %v3197
        %v3199 = vcombine.low %v3191, %v3198
        %v3200 = vcombine.low %v2556, %v2558
        %v3201 = vcombine.low %v2627, %v2629
        %v3203 = vunpack.c.l.s4 1983009808
        %v3204 = vunpack.c.0.s8 %v3203
        %v3205 = vlaneseq
        %v3206 = vshrl.u32 %v3205, 7
        %v3207 = vsub.s32 %v3204, %v3206
        %v3208 = vrot.slane %v3200, %v3207
        %v3210 = vunpack.c.l.s4 1983009808
        %v3211 = vunpack.c.0.s8 %v3210
        %v3212 = vlaneseq
        %v3213 = vshrl.u32 %v3212, 7
        %v3214 = vsub.s32 %v3211, %v3213
        %v3215 = vrot.slane %v3201, %v3214
        %v3216 = vcombine.low %v3208, %v3215
        %v3217 = vcombine.low %v2698, %v2700
        %v3218 = vcombine.low %v2769, %v2771
        %v3220 = vunpack.c.l.s4 1983009808
        %v3221 = vunpack.c.0.s8 %v3220
        %v3222 = vlaneseq
        %v3223 = vshrl.u32 %v3222, 7
        %v3224 = vsub.s32 %v3221, %v3223
        %v3225 = vrot.slane %v3217, %v3224
        %v3227 = vunpack.c.l.s4 1983009808
        %v3228 = vunpack.c.0.s8 %v3227
        %v3229 = vlaneseq
        %v3230 = vshrl.u32 %v3229, 7
        %v3231 = vsub.s32 %v3228, %v3230
        %v3232 = vrot.slane %v3218, %v3231
        %v3233 = vcombine.low %v3225, %v3232
        %v3234 = vcombine.low %v2840, %v2842
        %v3235 = vcombine.low %v2911, %v2913
        %v3237 = vunpack.c.l.s4 1983009808
        %v3238 = vunpack.c.0.s8 %v3237
        %v3239 = vlaneseq
        %v3240 = vshrl.u32 %v3239, 7
        %v3241 = vsub.s32 %v3238, %v3240
        %v3242 = vrot.slane %v3234, %v3241
        %v3244 = vunpack.c.l.s4 1983009808
        %v3245 = vunpack.c.0.s8 %v3244
        %v3246 = vlaneseq
        %v3247 = vshrl.u32 %v3246, 7
        %v3248 = vsub.s32 %v3245, %v3247
        %v3249 = vrot.slane %v3235, %v3248
        %v3250 = vcombine.low %v3242, %v3249
        %3267 = vst [vmem:[%s234] sm:$0xff] %v2995
        %3268 = vst [vmem:[%s234 + $0x8] sm:$0xff] %v3012
        %3269 = vst [vmem:[%s234 + $0x10] sm:$0xff] %v3029
        %3270 = vst [vmem:[%s234 + $0x18] sm:$0xff] %v3046
        %3271 = vst [vmem:[%s234 + $0x20] sm:$0xff] %v3063
        %3272 = vst [vmem:[%s234 + $0x28] sm:$0xff] %v3080
        %3273 = vst [vmem:[%s234 + $0x30] sm:$0xff] %v3097
        %3274 = vst [vmem:[%s234 + $0x38] sm:$0xff] %v3114
        %3275 = vst [vmem:[%s234 + $0x40] sm:$0xff] %v3131
        %3276 = vst [vmem:[%s234 + $0x48] sm:$0xff] %v3148
        %3277 = vst [vmem:[%s234 + $0x50] sm:$0xff] %v3165
        %3278 = vst [vmem:[%s234 + $0x58] sm:$0xff] %v3182
        %3279 = vst [vmem:[%s234 + $0x60] sm:$0xff] %v3199
        %3280 = vst [vmem:[%s234 + $0x68] sm:$0xff] %v3216
        %3281 = vst [vmem:[%s234 + $0x70] sm:$0xff] %v3233
        %3282 = vst [vmem:[%s234 + $0x78] sm:$0xff] %v3250
        %s3283 = sand.u32 %s102, 1
        %s3284 = scalar_lea.sflag [#allocation4], %s3283
        %s3285 = sand.u32 %s102, 1
        %s3286 = smul.addr %s3285, 128
        %s3287 = scalar_lea.vmem [#allocation8], %s3286
        // Predicated region
        $region45: #{tpu_custom_call.1} parent=31 // pred_check
          %p3288 = pneg %p112
        $region46: #{tpu_custom_call.1} parent=31 // pred_check_branch
          %3290 = sbr.rel (%p3288) target = $region48
        $region47: #{tpu_custom_call.1} parent=31 // pred_region
          %s3291 = smul.u32 64, %s21
          %s3293 = ssub.s32 2048, 2048
          %3294 = vsyncadd %s3284, %s3293
          %s3295 = smul.addr %s3291, 32
          %s3296 = scalar_lea.hbm %s3, %s3295
          %s3298 = sshll.u32 %s3287, 4
          %s3299 = int_to_ptr.vmem [resolvable:$true] %s3298
          %3301 = dma.vmem_to_hbm [thread:$0]  %s3299, 2048, %s3296, %s3284
        $region48: #{tpu_custom_call.1} parent=31 // pred_fallthru
          _
      $region32: #{tpu_custom_call.1} parent=5 // pred_fallthru
        _
      %p3302 = scmp.le.s32.totalorder 2, %s16
      // Predicated region
      $region49: #{tpu_custom_call.1} parent=5 // pred_check
        %p3303 = pneg %p3302
      $region50: #{tpu_custom_call.1} parent=5 // pred_check_branch
        %3305 = sbr.rel (%p3303) target = $region52
      $region51: #{tpu_custom_call.1} parent=5 // pred_region
        %s3306 = ssub.s32 %s16, 2
        // Predicated region
        $region53: #{tpu_custom_call.1} parent=51 // pred_check
          %p3307 = pneg %p118
        $region54: #{tpu_custom_call.1} parent=51 // pred_check_branch
          %3309 = sbr.rel (%p3307) target = $region56
        $region55: #{tpu_custom_call.1} parent=51 // pred_region
          %s3310 = sand.u32 %s103, 1
          %s3311 = scalar_lea.sflag [#allocation4], %s3310
          %s3312 = sand.u32 %s103, 1
          %s3313 = smul.addr %s3312, 128
          %s3314 = scalar_lea.vmem [#allocation8], %s3313
          %3315 = dma.done %s3311, 2048
        $region56: #{tpu_custom_call.1} parent=51 // pred_fallthru
          _
      $region52: #{tpu_custom_call.1} parent=5 // pred_fallthru
        _
    $region6: #{tpu_custom_call.1} parent=1 // loop_footer
      %s20 = sadd.s32 1, %s16
    $region7: #{tpu_custom_call.1} parent=1 // loop_footer_branch
      %15 = sbr.rel target = $region3
    $region8: #{tpu_custom_call.1} parent=1 // loop_exit
      _
    %3316 = vsyncpa [#allocation3], 1
    %s3317 = scalar_lea.sflag [#allocation3], 1
    %3318 = vsyncpa %s3317, 1
    %3319 = vsyncpa [#allocation6], 1
    %s3320 = scalar_lea.sflag [#allocation6], 1
    %3321 = vsyncpa %s3320, 1
    %3322 = vsyncpa [#allocation4], 1
    %s3323 = scalar_lea.sflag [#allocation4], 1
    %3324 = vsyncpa %s3323, 1

</llo_original>
